<compile_context>
chip_gen: v5e
topology: v5e:2x2
jax: 0.10.0
libtpu: 0.0.40
codegen_flags: <defaults>
</compile_context>

<pallas_src>
import jax
import jax.numpy as jnp
from jax import lax
from jax.experimental import pallas as pl
from jax.experimental.pallas import tpu as pltpu

F32 = jnp.float32


# ---------------------------------------------------------------------------
# Kernel: fused linear1 -> tanh -> linear2 -> online softmax over T ->
#         attentive mean/std -> lane-dense [mean | std] store.
# ---------------------------------------------------------------------------
def _make_asp_kernel(nb, d, bdim, t_tile, t_valid, t_padded, compute_dtype):
    masked = t_padded != t_valid  # last time tile carries zero padding

    def kernel(x_ref, w1_ref, b1_ref, w2_ref, b2_ref, out_ref,
               m_sc, l_sc, s1_sc, s2_sc):
        t_idx = pl.program_id(1)

        @pl.when(t_idx == 0)
        def _init():
            m_sc[...] = jnp.full_like(m_sc, -jnp.inf)
            l_sc[...] = jnp.zeros_like(l_sc)
            s1_sc[...] = jnp.zeros_like(s1_sc)
            s2_sc[...] = jnp.zeros_like(s2_sc)

        x = x_ref[...].astype(F32)                 # (nb, d, tt) stats in f32
        xc = x.astype(compute_dtype)               # bf16 MXU operand
        w1 = w1_ref[...]
        w2 = w2_ref[...]
        # Hoist bias broadcasts out of the per-batch loop (no CSE of
        # broadcast_in_dim inside the unrolled loop otherwise).
        b1 = jnp.broadcast_to(b1_ref[...], (bdim, t_tile))
        b2 = jnp.broadcast_to(b2_ref[...], (d, t_tile))

        # Attention logits z = W2 @ tanh(W1 @ x + b1) + b2 per batch element.
        # nb is small, so the loop unrolls into plain 2-D MXU dots (the batch
        # slice xc[i] is a view offset, no relayout).
        zs = []
        for i in range(nb):
            a = jnp.tanh(jnp.dot(w1, xc[i], preferred_element_type=F32) + b1)
            z_i = jnp.dot(w2, a.astype(compute_dtype),
                          preferred_element_type=F32) + b2
            zs.append(z_i[None])
        z = zs[0] if nb == 1 else jnp.concatenate(zs, axis=0)   # (nb, d, tt)

        if masked:  # exclude zero-padded time steps from the softmax
            col = (lax.broadcasted_iota(jnp.int32, (1, 1, t_tile), 2)
                   + t_idx * t_tile)
            z = jnp.where(col < t_valid, z, -jnp.inf)

        # Online (flash-style) softmax statistics accumulation over T tiles.
        m_prev = m_sc[...]
        m_new = jnp.maximum(m_prev, jnp.max(z, axis=-1, keepdims=True))
        corr = jnp.exp(m_prev - m_new)
        p = jnp.exp(z - m_new)                      # un-normalized alpha
        px = p * x                                  # reused for mean AND E[x^2]
        l_sc[...] = corr * l_sc[...] + jnp.sum(p, axis=-1, keepdims=True)
        s1_sc[...] = corr * s1_sc[...] + jnp.sum(px, axis=-1, keepdims=True)
        s2_sc[...] = corr * s2_sc[...] + jnp.sum(px * x, axis=-1, keepdims=True)
        m_sc[...] = m_new

        @pl.when(t_idx == pl.num_programs(1) - 1)
        def _finalize():
            inv_l = pl.reciprocal(l_sc[...], approx=True)        # (nb, d, 1)
            mean = s1_sc[...] * inv_l
            ex2 = s2_sc[...] * inv_l
            std = jnp.sqrt(jnp.maximum(ex2 - mean * mean, 1e-9))
            # Transpose the (d, 1) columns to lane-dense rows (XLU slot) and
            # emit a single dense (nb, 1, 2d) block == torch.cat([mean, std]).
            mean_row = jnp.swapaxes(mean, 1, 2)      # (nb, 1, d)
            std_row = jnp.swapaxes(std, 1, 2)        # (nb, 1, d)
            out_ref[...] = jnp.concatenate([mean_row, std_row], axis=-1)

    return kernel


# ---------------------------------------------------------------------------
# Host-side tile selection: bound the x block so the double-buffered pipeline
# stays well inside VMEM (v7x budget), keep >= 2 parallel batch steps.
# ---------------------------------------------------------------------------
def _choose_tiles(n, d, t, itemsize, t_tile_max=512, budget_bytes=8 << 20):
    if t <= t_tile_max:
        tt = t
        t_pad = t
    else:
        tt = t_tile_max
        while tt > 128 and d * tt * itemsize > budget_bytes:
            tt //= 2                                # stays a multiple of 128
        t_pad = pl.cdiv(t, tt) * tt

    nb = 1
    for cand in range(min(8, n), 0, -1):
        if n % cand == 0 and cand * d * tt * itemsize <= budget_bytes:
            nb = cand
            break
    # Keep >= 2 "parallel" grid steps when N >= 2 so both v7x TensorCores
    # receive work.
    if n >= 2 and n // nb < 2:
        nb = n // 2
        while nb > 1 and n % nb:
            nb -= 1
        nb = max(1, nb)
    return nb, tt, t_pad


# ---------------------------------------------------------------------------
# Wrapper: host-side layout prep (padding / batch blocking) + pallas_call.
# ---------------------------------------------------------------------------
def attentive_stats_pool(x, w1, b1, w2, b2, *, compute_dtype=jnp.bfloat16):
    """AttentiveStatsPool forward.

    x : (N, D, T)  (torch Conv1d layout: channels, then time)
    w1: (B, D), b1: (B,)  -- linear1 (Conv1d k=1) weight (squeezed) / bias
    w2: (D, B), b2: (D,)  -- linear2 (Conv1d k=1) weight (squeezed) / bias
    returns (N, 2*D) float32 == torch.cat([mean, std], dim=1)
    """
    n, d, t = x.shape
    bdim = w1.shape[0]

    nb, tt, t_pad = _choose_tiles(n, d, t, x.dtype.itemsize)
    if t_pad != t:
        x = jnp.pad(x, ((0, 0), (0, 0), (0, t_pad - t)))

    w1c = w1.astype(compute_dtype)                  # bf16 weights: half the DMA
    w2c = w2.astype(compute_dtype)
    b1c = b1.reshape(bdim, 1).astype(F32)
    b2c = b2.reshape(d, 1).astype(F32)

    grid = (n // nb, t_pad // tt)

    x_block_bytes = nb * d * tt * x.dtype.itemsize
    vmem_limit = int(min(48 * 1024 * 1024,
                         max(16 * 1024 * 1024,
                             3 * x_block_bytes + 4 * 1024 * 1024)))

    out = pl.pallas_call(
        _make_asp_kernel(nb, d, bdim, tt, t, t_pad, compute_dtype),
        grid=grid,
        in_specs=[
            pl.BlockSpec((nb, d, tt), lambda b, s: (b, 0, s)),   # x time tiles
            pl.BlockSpec((bdim, d), lambda b, s: (0, 0)),        # W1 (resident)
            pl.BlockSpec((bdim, 1), lambda b, s: (0, 0)),        # b1
            pl.BlockSpec((d, bdim), lambda b, s: (0, 0)),        # W2
            pl.BlockSpec((d, 1), lambda b, s: (0, 0)),           # b2
        ],
        out_specs=pl.BlockSpec((nb, 1, 2 * d), lambda b, s: (b, 0, 0)),
        out_shape=jax.ShapeDtypeStruct((n, 1, 2 * d), F32),
        scratch_shapes=[pltpu.VMEM((nb, d, 1), F32)] * 4,        # m, l, s1, s2
        compiler_params=pltpu.CompilerParams(
            dimension_semantics=("parallel", "arbitrary"),
            vmem_limit_bytes=vmem_limit),
    )(x, w1c, b1c, w2c, b2c)
    return out.reshape(n, 2 * d)   # metadata-only reshape (no data movement)


# ---------------------------------------------------------------------------
# Pure-JAX reference (f32 everywhere) for validation.
# ---------------------------------------------------------------------------
def asp_reference(x, w1, b1, w2, b2):
    a = jnp.tanh(jnp.einsum("kd,ndt->nkt", w1, x) + b1[None, :, None])
    z = jnp.einsum("dk,nkt->ndt", w2, a) + b2[None, :, None]
    alpha = jax.nn.softmax(z, axis=2)
    mean = jnp.sum(alpha * x, axis=2)
    resid = jnp.sum(alpha * x * x, axis=2) - mean * mean
    std = jnp.sqrt(jnp.maximum(resid, 1e-9))
    return jnp.concatenate([mean, std], axis=1)


def _run_case(key, n, d, bdim, t):
    kw1, kb1, kw2, kb2, kx = jax.random.split(key, 5)
    w1 = jax.random.normal(kw1, (bdim, d), F32) / jnp.sqrt(jnp.float32(d))
    b1 = 0.1 * jax.random.normal(kb1, (bdim,), F32)
    w2 = jax.random.normal(kw2, (d, bdim), F32) / jnp.sqrt(jnp.float32(bdim))
    b2 = 0.1 * jax.random.normal(kb2, (d,), F32)
    x = jax.random.normal(kx, (n, d, t), F32)

    out = jax.jit(attentive_stats_pool)(x, w1, b1, w2, b2)
    out = jax.block_until_ready(out)
    ref = asp_reference(x, w1, b1, w2, b2)

    assert out.shape == (n, 2 * d), out.shape
    assert bool(jnp.all(jnp.isfinite(out)))
    err = float(jnp.max(jnp.abs(out - ref)))
    # bf16 MXU operands + approx reciprocal -> loose (but meaningful) tolerance.
    assert err < 5e-2, f"max abs err {err}"


if __name__ == "__main__":
    key = jax.random.PRNGKey(0)
    k1, k2, k3 = jax.random.split(key, 3)
    _run_case(k1, n=2, d=96, bdim=64, t=16)    # small, single-time-tile path
    _run_case(k2, n=2, d=96, bdim=64, t=640)   # T-tiled online softmax + masked tail
    _run_case(k3, n=8, d=96, bdim=64, t=16)    # batch-blocked path (nb > 1)
    print("KERNEL_OK")
</pallas_src>

<mosaic_0001>
module attributes {stable_mosaic.version = 11 : i64} {
  func.func @kernel(%arg0: i32, %arg1: i32, %arg2: memref<1x96x16xf32, #tpu.memory_space<vmem>>, %arg3: memref<64x96xbf16, #tpu.memory_space<vmem>>, %arg4: memref<64x1xf32, #tpu.memory_space<vmem>>, %arg5: memref<96x64xbf16, #tpu.memory_space<vmem>>, %arg6: memref<96x1xf32, #tpu.memory_space<vmem>>, %arg7: memref<1x1x192xf32, #tpu.memory_space<vmem>>, %arg8: memref<1x96x1xf32, #tpu.memory_space<vmem>>, %arg9: memref<1x96x1xf32, #tpu.memory_space<vmem>>, %arg10: memref<1x96x1xf32, #tpu.memory_space<vmem>>, %arg11: memref<1x96x1xf32, #tpu.memory_space<vmem>>) attributes {dimension_semantics = [#tpu.dimension_semantics<parallel>, #tpu.dimension_semantics<arbitrary>], iteration_bounds = array<i64: 2, 1>, scalar_prefetch = 0 : i64, scratch_operands = 4 : i64, tpu.core_type = #tpu.core_type<tc>, window_params = [{transform_indices = @transform_0, window_bounds = array<i64: 1, 96, 16>}, {pipeline_mode = #tpu.pipeline_mode<synchronous>, transform_indices = @transform_1, window_bounds = array<i64: 64, 96>}, {pipeline_mode = #tpu.pipeline_mode<synchronous>, transform_indices = @transform_2, window_bounds = array<i64: 64, 1>}, {pipeline_mode = #tpu.pipeline_mode<synchronous>, transform_indices = @transform_3, window_bounds = array<i64: 96, 64>}, {pipeline_mode = #tpu.pipeline_mode<synchronous>, transform_indices = @transform_4, window_bounds = array<i64: 96, 1>}, {transform_indices = @transform_5, window_bounds = array<i64: 1, 1, 192>}]} {
    %c0_i32 = arith.constant 0 : i32
    %0 = arith.cmpi eq, %arg1, %c0_i32 : i32
    %1 = arith.extui %0 : i1 to i32
    %c0_i32_0 = arith.constant 0 : i32
    %2 = arith.cmpi ne, %1, %c0_i32_0 : i32
    scf.if %2 {
      %cst_42 = arith.constant 0xFF800000 : f32
      %54 = vector.broadcast %cst_42 : f32 to vector<1x96x1xf32>
      %c0_43 = arith.constant 0 : index
      %c0_44 = arith.constant 0 : index
      %c0_45 = arith.constant 0 : index
      %55 = vector.load %arg8[%c0_43, %c0_44, %c0_45] : memref<1x96x1xf32, #tpu.memory_space<vmem>>, vector<1x96x1xf32>
      tpu.vector_store %arg8[%c0_43, %c0_44, %c0_45], %54 {strides = array<i32>} : memref<1x96x1xf32, #tpu.memory_space<vmem>>, vector<1x96x1xf32>,
      %cst_46 = arith.constant 0.000000e+00 : f32
      %56 = vector.broadcast %cst_46 : f32 to vector<1x96x1xf32>
      %c0_47 = arith.constant 0 : index
      %c0_48 = arith.constant 0 : index
      %c0_49 = arith.constant 0 : index
      %57 = vector.load %arg9[%c0_47, %c0_48, %c0_49] : memref<1x96x1xf32, #tpu.memory_space<vmem>>, vector<1x96x1xf32>
      tpu.vector_store %arg9[%c0_47, %c0_48, %c0_49], %56 {strides = array<i32>} : memref<1x96x1xf32, #tpu.memory_space<vmem>>, vector<1x96x1xf32>,
      %cst_50 = arith.constant 0.000000e+00 : f32
      %58 = vector.broadcast %cst_50 : f32 to vector<1x96x1xf32>
      %c0_51 = arith.constant 0 : index
      %c0_52 = arith.constant 0 : index
      %c0_53 = arith.constant 0 : index
      %59 = vector.load %arg10[%c0_51, %c0_52, %c0_53] : memref<1x96x1xf32, #tpu.memory_space<vmem>>, vector<1x96x1xf32>
      tpu.vector_store %arg10[%c0_51, %c0_52, %c0_53], %58 {strides = array<i32>} : memref<1x96x1xf32, #tpu.memory_space<vmem>>, vector<1x96x1xf32>,
      %cst_54 = arith.constant 0.000000e+00 : f32
      %60 = vector.broadcast %cst_54 : f32 to vector<1x96x1xf32>
      %c0_55 = arith.constant 0 : index
      %c0_56 = arith.constant 0 : index
      %c0_57 = arith.constant 0 : index
      %61 = vector.load %arg11[%c0_55, %c0_56, %c0_57] : memref<1x96x1xf32, #tpu.memory_space<vmem>>, vector<1x96x1xf32>
      tpu.vector_store %arg11[%c0_55, %c0_56, %c0_57], %60 {strides = array<i32>} : memref<1x96x1xf32, #tpu.memory_space<vmem>>, vector<1x96x1xf32>,
    } else {
    }
    %c0 = arith.constant 0 : index
    %c0_1 = arith.constant 0 : index
    %c0_2 = arith.constant 0 : index
    %3 = vector.load %arg2[%c0, %c0_1, %c0_2] : memref<1x96x16xf32, #tpu.memory_space<vmem>>, vector<1x96x16xf32>
    %4 = arith.truncf %3 : vector<1x96x16xf32> to vector<1x96x16xbf16>
    %c0_3 = arith.constant 0 : index
    %c0_4 = arith.constant 0 : index
    %5 = vector.load %arg3[%c0_3, %c0_4] : memref<64x96xbf16, #tpu.memory_space<vmem>>, vector<64x96xbf16>
    %c0_5 = arith.constant 0 : index
    %c0_6 = arith.constant 0 : index
    %6 = vector.load %arg5[%c0_5, %c0_6] : memref<96x64xbf16, #tpu.memory_space<vmem>>, vector<96x64xbf16>
    %c0_7 = arith.constant 0 : index
    %c0_8 = arith.constant 0 : index
    %7 = vector.load %arg4[%c0_7, %c0_8] : memref<64x1xf32, #tpu.memory_space<vmem>>, vector<64x1xf32>
    %8 = vector.shape_cast %7 : vector<64x1xf32> to vector<64x1xf32>
    %9 = vector.broadcast %8 : vector<64x1xf32> to vector<64x16xf32>
    %c0_9 = arith.constant 0 : index
    %c0_10 = arith.constant 0 : index
    %10 = vector.load %arg6[%c0_9, %c0_10] : memref<96x1xf32, #tpu.memory_space<vmem>>, vector<96x1xf32>
    %11 = vector.shape_cast %10 : vector<96x1xf32> to vector<96x1xf32>
    %12 = vector.broadcast %11 : vector<96x1xf32> to vector<96x16xf32>
    %13 = vector.shape_cast %4 : vector<1x96x16xbf16> to vector<96x16xbf16>
    %cst = arith.constant dense<0.000000e+00> : vector<64x16xf32>
    %14 = tpu.matmul %5, %13, %cst {dimension_numbers = #tpu.dot_dimension_numbers<[1], [0], [0], [1], [0, 0, 1, 1], [], []>} : vector<64x96xbf16>, vector<96x16xbf16>, vector<64x16xf32> -> vector<64x16xf32>
    %15 = arith.addf %14, %9 : vector<64x16xf32>
    %16 = math.tanh %15 : vector<64x16xf32>
    %17 = arith.truncf %16 : vector<64x16xf32> to vector<64x16xbf16>
    %cst_11 = arith.constant dense<0.000000e+00> : vector<96x16xf32>
    %18 = tpu.matmul %6, %17, %cst_11 {dimension_numbers = #tpu.dot_dimension_numbers<[1], [0], [0], [1], [0, 0, 1, 1], [], []>} : vector<96x64xbf16>, vector<64x16xbf16>, vector<96x16xf32> -> vector<96x16xf32>
    %19 = arith.addf %18, %12 : vector<96x16xf32>
    %20 = vector.shape_cast %19 : vector<96x16xf32> to vector<1x96x16xf32>
    %c0_12 = arith.constant 0 : index
    %c0_13 = arith.constant 0 : index
    %c0_14 = arith.constant 0 : index
    %21 = vector.load %arg8[%c0_12, %c0_13, %c0_14] : memref<1x96x1xf32, #tpu.memory_space<vmem>>, vector<1x96x1xf32>
    %cst_15 = arith.constant dense<0xFF800000> : vector<1x96xf32>
    %22 = vector.multi_reduction <maximumf>, %20, %cst_15 [2] : vector<1x96x16xf32> to vector<1x96xf32>
    %23 = vector.shape_cast %22 : vector<1x96xf32> to vector<1x96x1xf32>
    %24 = arith.maximumf %21, %23 : vector<1x96x1xf32>
    %25 = arith.subf %21, %24 : vector<1x96x1xf32>
    %26 = math.exp %25 : vector<1x96x1xf32>
    %27 = vector.broadcast %24 : vector<1x96x1xf32> to vector<1x96x16xf32>
    %28 = arith.subf %20, %27 : vector<1x96x16xf32>
    %29 = math.exp %28 : vector<1x96x16xf32>
    %30 = arith.mulf %29, %3 : vector<1x96x16xf32>
    %c0_16 = arith.constant 0 : index
    %c0_17 = arith.constant 0 : index
    %c0_18 = arith.constant 0 : index
    %31 = vector.load %arg9[%c0_16, %c0_17, %c0_18] : memref<1x96x1xf32, #tpu.memory_space<vmem>>, vector<1x96x1xf32>
    %32 = arith.mulf %26, %31 : vector<1x96x1xf32>
    %cst_19 = arith.constant dense<0.000000e+00> : vector<1x96xf32>
    %33 = vector.multi_reduction <add>, %29, %cst_19 [2] : vector<1x96x16xf32> to vector<1x96xf32>
    %34 = vector.shape_cast %33 : vector<1x96xf32> to vector<1x96x1xf32>
    %35 = arith.addf %32, %34 : vector<1x96x1xf32>
    %c0_20 = arith.constant 0 : index
    %c0_21 = arith.constant 0 : index
    %c0_22 = arith.constant 0 : index
    %36 = vector.load %arg9[%c0_20, %c0_21, %c0_22] : memref<1x96x1xf32, #tpu.memory_space<vmem>>, vector<1x96x1xf32>
    tpu.vector_store %arg9[%c0_20, %c0_21, %c0_22], %35 {strides = array<i32>} : memref<1x96x1xf32, #tpu.memory_space<vmem>>, vector<1x96x1xf32>,
    %c0_23 = arith.constant 0 : index
    %c0_24 = arith.constant 0 : index
    %c0_25 = arith.constant 0 : index
    %37 = vector.load %arg10[%c0_23, %c0_24, %c0_25] : memref<1x96x1xf32, #tpu.memory_space<vmem>>, vector<1x96x1xf32>
    %38 = arith.mulf %26, %37 : vector<1x96x1xf32>
    %cst_26 = arith.constant dense<0.000000e+00> : vector<1x96xf32>
    %39 = vector.multi_reduction <add>, %30, %cst_26 [2] : vector<1x96x16xf32> to vector<1x96xf32>
    %40 = vector.shape_cast %39 : vector<1x96xf32> to vector<1x96x1xf32>
    %41 = arith.addf %38, %40 : vector<1x96x1xf32>
    %c0_27 = arith.constant 0 : index
    %c0_28 = arith.constant 0 : index
    %c0_29 = arith.constant 0 : index
    %42 = vector.load %arg10[%c0_27, %c0_28, %c0_29] : memref<1x96x1xf32, #tpu.memory_space<vmem>>, vector<1x96x1xf32>
    tpu.vector_store %arg10[%c0_27, %c0_28, %c0_29], %41 {strides = array<i32>} : memref<1x96x1xf32, #tpu.memory_space<vmem>>, vector<1x96x1xf32>,
    %c0_30 = arith.constant 0 : index
    %c0_31 = arith.constant 0 : index
    %c0_32 = arith.constant 0 : index
    %43 = vector.load %arg11[%c0_30, %c0_31, %c0_32] : memref<1x96x1xf32, #tpu.memory_space<vmem>>, vector<1x96x1xf32>
    %44 = arith.mulf %26, %43 : vector<1x96x1xf32>
    %45 = arith.mulf %30, %3 : vector<1x96x16xf32>
    %cst_33 = arith.constant dense<0.000000e+00> : vector<1x96xf32>
    %46 = vector.multi_reduction <add>, %45, %cst_33 [2] : vector<1x96x16xf32> to vector<1x96xf32>
    %47 = vector.shape_cast %46 : vector<1x96xf32> to vector<1x96x1xf32>
    %48 = arith.addf %44, %47 : vector<1x96x1xf32>
    %c0_34 = arith.constant 0 : index
    %c0_35 = arith.constant 0 : index
    %c0_36 = arith.constant 0 : index
    %49 = vector.load %arg11[%c0_34, %c0_35, %c0_36] : memref<1x96x1xf32, #tpu.memory_space<vmem>>, vector<1x96x1xf32>
    tpu.vector_store %arg11[%c0_34, %c0_35, %c0_36], %48 {strides = array<i32>} : memref<1x96x1xf32, #tpu.memory_space<vmem>>, vector<1x96x1xf32>,
    %c0_37 = arith.constant 0 : index
    %c0_38 = arith.constant 0 : index
    %c0_39 = arith.constant 0 : index
    %50 = vector.load %arg8[%c0_37, %c0_38, %c0_39] : memref<1x96x1xf32, #tpu.memory_space<vmem>>, vector<1x96x1xf32>
    tpu.vector_store %arg8[%c0_37, %c0_38, %c0_39], %24 {strides = array<i32>} : memref<1x96x1xf32, #tpu.memory_space<vmem>>, vector<1x96x1xf32>,
    %c0_i32_40 = arith.constant 0 : i32
    %51 = arith.cmpi eq, %arg1, %c0_i32_40 : i32
    %52 = arith.extui %51 : i1 to i32
    %c0_i32_41 = arith.constant 0 : i32
    %53 = arith.cmpi ne, %52, %c0_i32_41 : i32
    scf.if %53 {
      %c0_42 = arith.constant 0 : index
      %c0_43 = arith.constant 0 : index
      %c0_44 = arith.constant 0 : index
      %54 = vector.load %arg9[%c0_42, %c0_43, %c0_44] : memref<1x96x1xf32, #tpu.memory_space<vmem>>, vector<1x96x1xf32>
      %55 = tpu.reciprocal %54 {approx = true} : vector<1x96x1xf32> -> vector<1x96x1xf32>
      %c0_45 = arith.constant 0 : index
      %c0_46 = arith.constant 0 : index
      %c0_47 = arith.constant 0 : index
      %56 = vector.load %arg10[%c0_45, %c0_46, %c0_47] : memref<1x96x1xf32, #tpu.memory_space<vmem>>, vector<1x96x1xf32>
      %57 = arith.mulf %56, %55 : vector<1x96x1xf32>
      %c0_48 = arith.constant 0 : index
      %c0_49 = arith.constant 0 : index
      %c0_50 = arith.constant 0 : index
      %58 = vector.load %arg11[%c0_48, %c0_49, %c0_50] : memref<1x96x1xf32, #tpu.memory_space<vmem>>, vector<1x96x1xf32>
      %59 = arith.mulf %58, %55 : vector<1x96x1xf32>
      %60 = arith.mulf %57, %57 : vector<1x96x1xf32>
      %61 = arith.subf %59, %60 : vector<1x96x1xf32>
      %cst_51 = arith.constant 9.99999971E-10 : f32
      %62 = vector.broadcast %cst_51 : f32 to vector<1x96x1xf32>
      %63 = arith.maximumf %61, %62 : vector<1x96x1xf32>
      %64 = math.sqrt %63 : vector<1x96x1xf32>
      %65 = tpu.transpose %57, [0, 2, 1] : vector<1x96x1xf32> -> vector<1x1x96xf32>
      %66 = tpu.transpose %64, [0, 2, 1] : vector<1x96x1xf32> -> vector<1x1x96xf32>
      %67 = tpu.concatenate %65, %66 in 2 : vector<1x1x96xf32>, vector<1x1x96xf32> -> vector<1x1x192xf32>
      %c0_52 = arith.constant 0 : index
      %c0_53 = arith.constant 0 : index
      %c0_54 = arith.constant 0 : index
      %68 = vector.load %arg7[%c0_52, %c0_53, %c0_54] : memref<1x1x192xf32, #tpu.memory_space<vmem>>, vector<1x1x192xf32>
      tpu.vector_store %arg7[%c0_52, %c0_53, %c0_54], %67 {strides = array<i32>} : memref<1x1x192xf32, #tpu.memory_space<vmem>>, vector<1x1x192xf32>,
    } else {
    }
    return
  }
  func.func @transform_0(%arg0: i32, %arg1: i32) -> (i32, i32, i32) {
    %c0_i32 = arith.constant 0 : i32
    %c0_i32_0 = arith.constant 0 : i32
    return %arg0, %c0_i32, %arg1 : i32, i32, i32
  }
  func.func @transform_1(%arg0: i32, %arg1: i32) -> (i32, i32) {
    %c0_i32 = arith.constant 0 : i32
    %c0_i32_0 = arith.constant 0 : i32
    %c0_i32_1 = arith.constant 0 : i32
    return %c0_i32, %c0_i32_0 : i32, i32
  }
  func.func @transform_2(%arg0: i32, %arg1: i32) -> (i32, i32) {
    %c0_i32 = arith.constant 0 : i32
    %c0_i32_0 = arith.constant 0 : i32
    %c0_i32_1 = arith.constant 0 : i32
    return %c0_i32, %c0_i32_0 : i32, i32
  }
  func.func @transform_3(%arg0: i32, %arg1: i32) -> (i32, i32) {
    %c0_i32 = arith.constant 0 : i32
    %c0_i32_0 = arith.constant 0 : i32
    %c0_i32_1 = arith.constant 0 : i32
    return %c0_i32, %c0_i32_0 : i32, i32
  }
  func.func @transform_4(%arg0: i32, %arg1: i32) -> (i32, i32) {
    %c0_i32 = arith.constant 0 : i32
    %c0_i32_0 = arith.constant 0 : i32
    %c0_i32_1 = arith.constant 0 : i32
    return %c0_i32, %c0_i32_0 : i32, i32
  }
  func.func @transform_5(%arg0: i32, %arg1: i32) -> (i32, i32, i32) {
    %c0_i32 = arith.constant 0 : i32
    %c0_i32_0 = arith.constant 0 : i32
    %c0_i32_1 = arith.constant 0 : i32
    return %arg0, %c0_i32, %c0_i32_0 : i32, i32, i32
  }
}

</mosaic_0001>

<llo_original>
// kernel: attentive_stats_pool.1
$region0: #{attentive_stats_pool.1}
  #allocation0 [shape = 'u32[]', space=smem, size = 0x4, offset = 0x4, fixed_abs, tag = 'smem constant byte address 0x4 - core index']
  #allocation1 [shape = 'u32[72,128]{1,0:T(1,128)}', space=vmem, size = 0x9000, scoped, tag = 'internal scratch']
  #allocation2 [shape = 'f32[1,96,1]{2,1,0:T(8,128)}', space=vmem, size = 0xc000, scoped, tag = 'scratch operand']
  #allocation3 [shape = 'f32[1,96,1]{2,1,0:T(8,128)}', space=vmem, size = 0xc000, scoped, tag = 'scratch operand']
  #allocation4 [shape = 'f32[1,96,1]{2,1,0:T(8,128)}', space=vmem, size = 0xc000, scoped, tag = 'scratch operand']
  #allocation5 [shape = 'f32[1,96,1]{2,1,0:T(8,128)}', space=vmem, size = 0xc000, scoped, tag = 'scratch operand']
  %s0 = inlined_call_operand.vmem [shape: f32[2,96,16], index: 0, kind: input, shape index: {}]
  %s1 = inlined_call_operand.vmem [shape: bf16[64,96], index: 1, kind: input, shape index: {}]
  %s2 = inlined_call_operand.vmem [shape: f32[64,1], index: 2, kind: input, shape index: {}]
  %s3 = inlined_call_operand.vmem [shape: bf16[96,64], index: 3, kind: input, shape index: {}]
  %s4 = inlined_call_operand.vmem [shape: f32[96,1], index: 4, kind: input, shape index: {}]
  %s5 = inlined_call_operand.vmem [shape: f32[2,1,192], index: 5, kind: output, shape index: {}]
  %s6 = sld [smem:[#allocation0]]
  $region61: #{attentive_stats_pool.1} parent=0
    _
  %s8 = ssub.s32 1, %s6
  %s9 = scalar_select 0, %s8, %s6
  loop: start=0, step=1, limit=4
  $region2: #{attentive_stats_pool.1} parent=0 // loop_pre_header
    _
  $region3: #{attentive_stats_pool.1} parent=0 // loop_header
    %s11 = sphi 0, %s15
    %p12 = scmp.ge.s32.totalorder %s11, 4
    %s18 = sphi 0, %s30
    %s19 = sphi 0, %s26
    %s20 = sphi 0, %s18
    %s21 = sphi 0, %s19
    %s22 = sphi 0, %s20
    %s23 = sphi 0, %s21
    %s35 = sphi 0, %s37
    %s38 = sphi 0, %s35
    %s39 = sphi 0, %s38
    %s55 = sphi 0, %s39
    %s59 = sphi 0, %s59
    %s61 = sphi 0, %s59
    %s62 = sphi 0, %s61
    %s76 = sphi 0, %s62
    %s80 = sphi 0, %s80
    %s82 = sphi 0, %s80
    %s83 = sphi 0, %s82
    %s97 = sphi 0, %s83
    %s101 = sphi 0, %s101
    %s103 = sphi 0, %s101
    %s104 = sphi 0, %s103
    %s118 = sphi 0, %s104
    %s122 = sphi 0, %s122
    %s124 = sphi 0, %s122
    %s125 = sphi 0, %s124
    %s139 = sphi 0, %s125
    %s145 = sphi 0, %s147
    %s148 = sphi 0, %s145
    %s149 = sphi 0, %s148
    %s165 = sphi 0, %s149
  $region4: #{attentive_stats_pool.1} parent=0 // loop_header_branch
    %14 = sbr.rel (%p12) target = $region8
  $region5: #{attentive_stats_pool.1} parent=0 // loop_body
    %s16 = ssub.s32 %s11, 1
    %s17 = ssub.s32 %s11, 2
    %s24 = sadd.s32 1, %s19
    %p25 = scmp.ge.s32.totalorder %s24, 1
    %s26 = scalar_select %p25, 0, %s24
    %s27 = sadd.s32 1, %s18
    %s28 = scalar_select %p25, %s27, %s18
    %p29 = scmp.ge.s32.totalorder %s28, 2
    %s30 = scalar_select %p29, 0, %s28
    %s31 = ssub.s32 %s18, %s30
    %s32 = ssub.s32 %s19, %s26
    %s33 = sor.u32 %s31, %s32
    %p34 = scmp.eq.s32.totalorder %s33, 0
    %s36 = sadd.s32 %s35, 1
    %s37 = scalar_select %p34, %s35, %s36
    %p40 = pneg %p34
    %p41 = scmp.eq.s32.totalorder %s11, 1
    %p42 = por %p40, %p41
    %p43 = scmp.ne.s32.totalorder %s35, %s38
    %p44 = scmp.eq.s32.totalorder %s11, 0
    %p45 = por %p43, %p44
    %p46 = scmp.ne.s32.totalorder %s35, %s38
    %p47 = scmp.eq.s32.totalorder %s16, 1
    %p48 = por %p46, %p47
    %p49 = scmp.ne.s32.totalorder %s38, %s39
    %p50 = scmp.eq.s32.totalorder %s16, 0
    %p51 = por %p49, %p50
    %p52 = scmp.ne.s32.totalorder %s38, %s39
    %p53 = scmp.eq.s32.totalorder %s17, 1
    %p54 = por %p52, %p53
    %p56 = scmp.ne.s32.totalorder %s39, %s55
    %p57 = scmp.eq.s32.totalorder %s17, 0
    %p58 = por %p56, %p57
    %s60 = sadd.s32 %s59, 1
    %p63 = scmp.eq.s32.totalorder %s11, 1
    %p64 = scmp.ne.s32.totalorder %s59, %s61
    %p65 = scmp.eq.s32.totalorder %s11, 0
    %p66 = por %p64, %p65
    %p67 = scmp.ne.s32.totalorder %s59, %s61
    %p68 = scmp.eq.s32.totalorder %s16, 1
    %p69 = por %p67, %p68
    %p70 = scmp.ne.s32.totalorder %s61, %s62
    %p71 = scmp.eq.s32.totalorder %s16, 0
    %p72 = por %p70, %p71
    %p73 = scmp.ne.s32.totalorder %s61, %s62
    %p74 = scmp.eq.s32.totalorder %s17, 1
    %p75 = por %p73, %p74
    %p77 = scmp.ne.s32.totalorder %s62, %s76
    %p78 = scmp.eq.s32.totalorder %s17, 0
    %p79 = por %p77, %p78
    %s81 = sadd.s32 %s80, 1
    %p84 = scmp.eq.s32.totalorder %s11, 1
    %p85 = scmp.ne.s32.totalorder %s80, %s82
    %p86 = scmp.eq.s32.totalorder %s11, 0
    %p87 = por %p85, %p86
    %p88 = scmp.ne.s32.totalorder %s80, %s82
    %p89 = scmp.eq.s32.totalorder %s16, 1
    %p90 = por %p88, %p89
    %p91 = scmp.ne.s32.totalorder %s82, %s83
    %p92 = scmp.eq.s32.totalorder %s16, 0
    %p93 = por %p91, %p92
    %p94 = scmp.ne.s32.totalorder %s82, %s83
    %p95 = scmp.eq.s32.totalorder %s17, 1
    %p96 = por %p94, %p95
    %p98 = scmp.ne.s32.totalorder %s83, %s97
    %p99 = scmp.eq.s32.totalorder %s17, 0
    %p100 = por %p98, %p99
    %s102 = sadd.s32 %s101, 1
    %p105 = scmp.eq.s32.totalorder %s11, 1
    %p106 = scmp.ne.s32.totalorder %s101, %s103
    %p107 = scmp.eq.s32.totalorder %s11, 0
    %p108 = por %p106, %p107
    %p109 = scmp.ne.s32.totalorder %s101, %s103
    %p110 = scmp.eq.s32.totalorder %s16, 1
    %p111 = por %p109, %p110
    %p112 = scmp.ne.s32.totalorder %s103, %s104
    %p113 = scmp.eq.s32.totalorder %s16, 0
    %p114 = por %p112, %p113
    %p115 = scmp.ne.s32.totalorder %s103, %s104
    %p116 = scmp.eq.s32.totalorder %s17, 1
    %p117 = por %p115, %p116
    %p119 = scmp.ne.s32.totalorder %s104, %s118
    %p120 = scmp.eq.s32.totalorder %s17, 0
    %p121 = por %p119, %p120
    %s123 = sadd.s32 %s122, 1
    %p126 = scmp.eq.s32.totalorder %s11, 1
    %p127 = scmp.ne.s32.totalorder %s122, %s124
    %p128 = scmp.eq.s32.totalorder %s11, 0
    %p129 = por %p127, %p128
    %p130 = scmp.ne.s32.totalorder %s122, %s124
    %p131 = scmp.eq.s32.totalorder %s16, 1
    %p132 = por %p130, %p131
    %p133 = scmp.ne.s32.totalorder %s124, %s125
    %p134 = scmp.eq.s32.totalorder %s16, 0
    %p135 = por %p133, %p134
    %p136 = scmp.ne.s32.totalorder %s124, %s125
    %p137 = scmp.eq.s32.totalorder %s17, 1
    %p138 = por %p136, %p137
    %p140 = scmp.ne.s32.totalorder %s125, %s139
    %p141 = scmp.eq.s32.totalorder %s17, 0
    %p142 = por %p140, %p141
    %s143 = ssub.s32 %s18, %s30
    %p144 = scmp.eq.s32.totalorder %s143, 0
    %s146 = sadd.s32 %s145, 1
    %s147 = scalar_select %p144, %s145, %s146
    %p150 = pneg %p144
    %p151 = scmp.eq.s32.totalorder %s11, 1
    %p152 = por %p150, %p151
    %p153 = scmp.ne.s32.totalorder %s145, %s148
    %p154 = scmp.eq.s32.totalorder %s11, 0
    %p155 = por %p153, %p154
    %p156 = scmp.ne.s32.totalorder %s145, %s148
    %p157 = scmp.eq.s32.totalorder %s16, 1
    %p158 = por %p156, %p157
    %p159 = scmp.ne.s32.totalorder %s148, %s149
    %p160 = scmp.eq.s32.totalorder %s16, 0
    %p161 = por %p159, %p160
    %p162 = scmp.ne.s32.totalorder %s148, %s149
    %p163 = scmp.eq.s32.totalorder %s17, 1
    %p164 = por %p162, %p163
    %p166 = scmp.ne.s32.totalorder %s149, %s165
    %p167 = scmp.eq.s32.totalorder %s17, 0
    %p168 = por %p166, %p167
    %p169 = scmp.le.s32.totalorder 1, %s11
    %p170 = scmp.lt.s32.totalorder %s11, 3
    %p171 = pnand %p169, %p170
    %p172 = pneg %p171
    // Predicated region
    $region9: #{attentive_stats_pool.1} parent=5 // pred_check
      _
    $region10: #{attentive_stats_pool.1} parent=5 // pred_check_branch
      %174 = sbr.rel (%p171) target = $region12
    $region11: #{attentive_stats_pool.1} parent=5 // pred_region
      %s175 = ssub.s32 %s11, 1
      // Predicated region
      $region13: #{attentive_stats_pool.1} parent=11 // pred_check
        %p176 = pneg %p72
      $region14: #{attentive_stats_pool.1} parent=11 // pred_check_branch
        %178 = sbr.rel (%p176) target = $region16
      $region15: #{attentive_stats_pool.1} parent=11 // pred_region
        _
      $region16: #{attentive_stats_pool.1} parent=11 // pred_fallthru
        _
      // Predicated region
      $region17: #{attentive_stats_pool.1} parent=11 // pred_check
        %p179 = pneg %p93
      $region18: #{attentive_stats_pool.1} parent=11 // pred_check_branch
        %181 = sbr.rel (%p179) target = $region20
      $region19: #{attentive_stats_pool.1} parent=11 // pred_region
        _
      $region20: #{attentive_stats_pool.1} parent=11 // pred_fallthru
        _
      // Predicated region
      $region21: #{attentive_stats_pool.1} parent=11 // pred_check
        %p182 = pneg %p114
      $region22: #{attentive_stats_pool.1} parent=11 // pred_check_branch
        %184 = sbr.rel (%p182) target = $region24
      $region23: #{attentive_stats_pool.1} parent=11 // pred_region
        _
      $region24: #{attentive_stats_pool.1} parent=11 // pred_fallthru
        _
      // Predicated region
      $region25: #{attentive_stats_pool.1} parent=11 // pred_check
        %p185 = pneg %p135
      $region26: #{attentive_stats_pool.1} parent=11 // pred_check_branch
        %187 = sbr.rel (%p185) target = $region28
      $region27: #{attentive_stats_pool.1} parent=11 // pred_region
        _
      $region28: #{attentive_stats_pool.1} parent=11 // pred_fallthru
        _
    $region12: #{attentive_stats_pool.1} parent=5 // pred_fallthru
      _
    %p188 = scmp.lt.s32.totalorder %s11, 2
    // Predicated region
    $region29: #{attentive_stats_pool.1} parent=5 // pred_check
      %p189 = pneg %p188
    $region30: #{attentive_stats_pool.1} parent=5 // pred_check_branch
      %191 = sbr.rel (%p189) target = $region32
    $region31: #{attentive_stats_pool.1} parent=5 // pred_region
      // Predicated region
      $region33: #{attentive_stats_pool.1} parent=31 // pred_check
        %p192 = pneg %p45
      $region34: #{attentive_stats_pool.1} parent=31 // pred_check_branch
        %194 = sbr.rel (%p192) target = $region36
      $region35: #{attentive_stats_pool.1} parent=31 // pred_region
        %p195 = scmp.lt.s32.totalorder %s18, 1
        %s196 = scalar_select %p195, %s18, 1
        %p197 = scmp.lt.s32.totalorder %s19, 0
        %s198 = scalar_select %p197, %s19, 0
        %s199 = smul.addr %s196, 12
        %s200 = sadd.s32 %s198, %s199
        %s201 = smul.addr %s200, 8
        %s202 = scalar_lea.vmem %s0, %s201
      $region36: #{attentive_stats_pool.1} parent=31 // pred_fallthru
        _
    $region32: #{attentive_stats_pool.1} parent=5 // pred_fallthru
      _
    %p203 = scmp.le.s32.totalorder 1, %s11
    %p204 = scmp.lt.s32.totalorder %s11, 3
    %p205 = pnand %p203, %p204
    %p206 = pneg %p205
    // Predicated region
    $region37: #{attentive_stats_pool.1} parent=5 // pred_check
      _
    $region38: #{attentive_stats_pool.1} parent=5 // pred_check_branch
      %208 = sbr.rel (%p205) target = $region40
    $region39: #{attentive_stats_pool.1} parent=5 // pred_region
      %s209 = ssub.s32 %s11, 1
      %p210 = scmp.lt.s32.totalorder %s20, 1
      %s211 = scalar_select %p210, %s20, 1
      %p212 = scmp.lt.s32.totalorder %s21, 0
      %s213 = scalar_select %p212, %s21, 0
      %s214 = smul.addr %s211, 12
      %s215 = sadd.s32 %s213, %s214
      %s216 = smul.addr %s215, 8
      %s217 = scalar_lea.vmem %s0, %s216
      %p218 = pneg %p51
      %p219 = pneg %p48
      %p220 = pneg %p72
      %p221 = pneg %p69
      %p222 = pneg %p93
      %p223 = pneg %p90
      %p224 = pneg %p114
      %p225 = pneg %p111
      %p226 = pneg %p135
      %p227 = pneg %p132
      %p228 = pneg %p161
      %p229 = pneg %p158
      %p230 = scmp.lt.s32.totalorder %s20, 1
      %s231 = scalar_select %p230, %s20, 1
      %s232 = smul.addr %s231, 2
      %s233 = scalar_lea.vmem %s5, %s232
      %p234 = scmp.lt.s32.totalorder %s20, 1
      %s235 = scalar_select %p234, %s20, 1
      %p236 = scmp.lt.s32.totalorder %s21, 0
      %s237 = scalar_select %p236, %s21, 0
      %s238 = smul.addr %s235, 12
      %s239 = sadd.s32 %s237, %s238
      %s240 = smul.addr %s239, 8
      %s241 = scalar_lea.vmem %s0, %s240
      %p242 = scmp.lt.s32.totalorder %s20, 1
      %s243 = scalar_select %p242, %s20, 1
      %s244 = smul.addr %s243, 2
      %s245 = scalar_lea.vmem %s5, %s244
      %p247 = scmp.eq.s32.totalorder %s21, 0
      // Predicated region
      $region41: #{attentive_stats_pool.1} parent=39 // pred_check
        %p248 = pneg %p247
      $region42: #{attentive_stats_pool.1} parent=39 // pred_check_branch
        %250 = sbr.rel (%p248) target = $region44
      $region43: #{attentive_stats_pool.1} parent=39 // pred_region
        %vm251 = vcmask 7168
        %252 = vst.msk [vmem:[#allocation2] sm:$0xff] %vm251, -inf
        %253 = vst.msk [vmem:[#allocation2 + $0x8] sm:$0xff] %vm251, -inf
        %254 = vst.msk [vmem:[#allocation2 + $0x10] sm:$0xff] %vm251, -inf
        %255 = vst.msk [vmem:[#allocation2 + $0x18] sm:$0xff] %vm251, -inf
        %256 = vst.msk [vmem:[#allocation2 + $0x20] sm:$0xff] %vm251, -inf
        %257 = vst.msk [vmem:[#allocation2 + $0x28] sm:$0xff] %vm251, -inf
        %258 = vst.msk [vmem:[#allocation2 + $0x30] sm:$0xff] %vm251, -inf
        %259 = vst.msk [vmem:[#allocation2 + $0x38] sm:$0xff] %vm251, -inf
        %260 = vst.msk [vmem:[#allocation2 + $0x40] sm:$0xff] %vm251, -inf
        %261 = vst.msk [vmem:[#allocation2 + $0x48] sm:$0xff] %vm251, -inf
        %262 = vst.msk [vmem:[#allocation2 + $0x50] sm:$0xff] %vm251, -inf
        %263 = vst.msk [vmem:[#allocation2 + $0x58] sm:$0xff] %vm251, -inf
        %264 = vst.msk [vmem:[#allocation3] sm:$0xff] %vm251, 0.0
        %265 = vst.msk [vmem:[#allocation3 + $0x8] sm:$0xff] %vm251, 0.0
        %266 = vst.msk [vmem:[#allocation3 + $0x10] sm:$0xff] %vm251, 0.0
        %267 = vst.msk [vmem:[#allocation3 + $0x18] sm:$0xff] %vm251, 0.0
        %268 = vst.msk [vmem:[#allocation3 + $0x20] sm:$0xff] %vm251, 0.0
        %269 = vst.msk [vmem:[#allocation3 + $0x28] sm:$0xff] %vm251, 0.0
        %270 = vst.msk [vmem:[#allocation3 + $0x30] sm:$0xff] %vm251, 0.0
        %271 = vst.msk [vmem:[#allocation3 + $0x38] sm:$0xff] %vm251, 0.0
        %272 = vst.msk [vmem:[#allocation3 + $0x40] sm:$0xff] %vm251, 0.0
        %273 = vst.msk [vmem:[#allocation3 + $0x48] sm:$0xff] %vm251, 0.0
        %274 = vst.msk [vmem:[#allocation3 + $0x50] sm:$0xff] %vm251, 0.0
        %275 = vst.msk [vmem:[#allocation3 + $0x58] sm:$0xff] %vm251, 0.0
        %276 = vst.msk [vmem:[#allocation4] sm:$0xff] %vm251, 0.0
        %277 = vst.msk [vmem:[#allocation4 + $0x8] sm:$0xff] %vm251, 0.0
        %278 = vst.msk [vmem:[#allocation4 + $0x10] sm:$0xff] %vm251, 0.0
        %279 = vst.msk [vmem:[#allocation4 + $0x18] sm:$0xff] %vm251, 0.0
        %280 = vst.msk [vmem:[#allocation4 + $0x20] sm:$0xff] %vm251, 0.0
        %281 = vst.msk [vmem:[#allocation4 + $0x28] sm:$0xff] %vm251, 0.0
        %282 = vst.msk [vmem:[#allocation4 + $0x30] sm:$0xff] %vm251, 0.0
        %283 = vst.msk [vmem:[#allocation4 + $0x38] sm:$0xff] %vm251, 0.0
        %284 = vst.msk [vmem:[#allocation4 + $0x40] sm:$0xff] %vm251, 0.0
        %285 = vst.msk [vmem:[#allocation4 + $0x48] sm:$0xff] %vm251, 0.0
        %286 = vst.msk [vmem:[#allocation4 + $0x50] sm:$0xff] %vm251, 0.0
        %287 = vst.msk [vmem:[#allocation4 + $0x58] sm:$0xff] %vm251, 0.0
        %288 = vst.msk [vmem:[#allocation5] sm:$0xff] %vm251, 0.0
        %289 = vst.msk [vmem:[#allocation5 + $0x8] sm:$0xff] %vm251, 0.0
        %290 = vst.msk [vmem:[#allocation5 + $0x10] sm:$0xff] %vm251, 0.0
        %291 = vst.msk [vmem:[#allocation5 + $0x18] sm:$0xff] %vm251, 0.0
        %292 = vst.msk [vmem:[#allocation5 + $0x20] sm:$0xff] %vm251, 0.0
        %293 = vst.msk [vmem:[#allocation5 + $0x28] sm:$0xff] %vm251, 0.0
        %294 = vst.msk [vmem:[#allocation5 + $0x30] sm:$0xff] %vm251, 0.0
        %295 = vst.msk [vmem:[#allocation5 + $0x38] sm:$0xff] %vm251, 0.0
        %296 = vst.msk [vmem:[#allocation5 + $0x40] sm:$0xff] %vm251, 0.0
        %297 = vst.msk [vmem:[#allocation5 + $0x48] sm:$0xff] %vm251, 0.0
        %298 = vst.msk [vmem:[#allocation5 + $0x50] sm:$0xff] %vm251, 0.0
        %299 = vst.msk [vmem:[#allocation5 + $0x58] sm:$0xff] %vm251, 0.0
      $region44: #{attentive_stats_pool.1} parent=39 // pred_fallthru
        _
      %v300 = vld [vmem:[%s241] sm:$0xff]
      %v301 = vld [vmem:[%s241 + $0x8] sm:$0xff]
      %v302 = vld [vmem:[%s241 + $0x10] sm:$0xff]
      %v303 = vld [vmem:[%s241 + $0x18] sm:$0xff]
      %v304 = vld [vmem:[%s241 + $0x20] sm:$0xff]
      %v305 = vld [vmem:[%s241 + $0x28] sm:$0xff]
      %v306 = vld [vmem:[%s241 + $0x30] sm:$0xff]
      %v307 = vld [vmem:[%s241 + $0x38] sm:$0xff]
      %v308 = vld [vmem:[%s241 + $0x40] sm:$0xff]
      %v309 = vld [vmem:[%s241 + $0x48] sm:$0xff]
      %v310 = vld [vmem:[%s241 + $0x50] sm:$0xff]
      %v311 = vld [vmem:[%s241 + $0x58] sm:$0xff]
      %v312 = vpack.c.bf16 %v300, %v300
      %v313 = vpack.c.bf16 %v301, %v301
      %v314 = vpack.c.bf16 %v302, %v302
      %v315 = vpack.c.bf16 %v303, %v303
      %v316 = vpack.c.bf16 %v304, %v304
      %v317 = vpack.c.bf16 %v305, %v305
      %v318 = vpack.c.bf16 %v306, %v306
      %v319 = vpack.c.bf16 %v307, %v307
      %v320 = vpack.c.bf16 %v308, %v308
      %v321 = vpack.c.bf16 %v309, %v309
      %v322 = vpack.c.bf16 %v310, %v310
      %v323 = vpack.c.bf16 %v311, %v311
      %v324 = vld [vmem:[%s1] sm:$0xf]
      %v325 = vld [vmem:[%s1 + $0x4] sm:$0xf]
      %v326 = vld [vmem:[%s1 + $0x8] sm:$0xf]
      %v327 = vld [vmem:[%s1 + $0xc] sm:$0xf]
      %v328 = vld [vmem:[%s1 + $0x10] sm:$0xf]
      %v329 = vld [vmem:[%s1 + $0x14] sm:$0xf]
      %v330 = vld [vmem:[%s1 + $0x18] sm:$0xf]
      %v331 = vld [vmem:[%s1 + $0x1c] sm:$0xf]
      %v332 = vld [vmem:[%s3] sm:$0xf]
      %v333 = vld [vmem:[%s3 + $0x4] sm:$0xf]
      %v334 = vld [vmem:[%s3 + $0x8] sm:$0xf]
      %v335 = vld [vmem:[%s3 + $0xc] sm:$0xf]
      %v336 = vld [vmem:[%s3 + $0x10] sm:$0xf]
      %v337 = vld [vmem:[%s3 + $0x14] sm:$0xf]
      %v338 = vld [vmem:[%s3 + $0x18] sm:$0xf]
      %v339 = vld [vmem:[%s3 + $0x1c] sm:$0xf]
      %v340 = vld [vmem:[%s3 + $0x20] sm:$0xf]
      %v341 = vld [vmem:[%s3 + $0x24] sm:$0xf]
      %v342 = vld [vmem:[%s3 + $0x28] sm:$0xf]
      %v343 = vld [vmem:[%s3 + $0x2c] sm:$0xf]
      %v344 = vld [vmem:[%s2] sm:$0xff]
      %v345 = vld [vmem:[%s2 + $0x8] sm:$0xff]
      %v346 = vld [vmem:[%s2 + $0x10] sm:$0xff]
      %v347 = vld [vmem:[%s2 + $0x18] sm:$0xff]
      %v348 = vld [vmem:[%s2 + $0x20] sm:$0xff]
      %v349 = vld [vmem:[%s2 + $0x28] sm:$0xff]
      %v350 = vld [vmem:[%s2 + $0x30] sm:$0xff]
      %v351 = vld [vmem:[%s2 + $0x38] sm:$0xff]
      %353 = vset.pattern.permute.xlu0 0
      %354 = vperm.xlu0 %353, %v344
      %v355 = vpop.permute.xlu0 %354
      %358 = vset.pattern.permute.xlu0 0
      %359 = vperm.xlu0 %358, %v345
      %v360 = vpop.permute.xlu0 %359
      %363 = vset.pattern.permute.xlu0 0
      %364 = vperm.xlu0 %363, %v346
      %v365 = vpop.permute.xlu0 %364
      %368 = vset.pattern.permute.xlu0 0
      %369 = vperm.xlu0 %368, %v347
      %v370 = vpop.permute.xlu0 %369
      %373 = vset.pattern.permute.xlu0 0
      %374 = vperm.xlu0 %373, %v348
      %v375 = vpop.permute.xlu0 %374
      %378 = vset.pattern.permute.xlu0 0
      %379 = vperm.xlu0 %378, %v349
      %v380 = vpop.permute.xlu0 %379
      %383 = vset.pattern.permute.xlu0 0
      %384 = vperm.xlu0 %383, %v350
      %v385 = vpop.permute.xlu0 %384
      %388 = vset.pattern.permute.xlu0 0
      %389 = vperm.xlu0 %388, %v351
      %v390 = vpop.permute.xlu0 %389
      %v392 = vld [vmem:[%s4] sm:$0xff]
      %v393 = vld [vmem:[%s4 + $0x8] sm:$0xff]
      %v394 = vld [vmem:[%s4 + $0x10] sm:$0xff]
      %v395 = vld [vmem:[%s4 + $0x18] sm:$0xff]
      %v396 = vld [vmem:[%s4 + $0x20] sm:$0xff]
      %v397 = vld [vmem:[%s4 + $0x28] sm:$0xff]
      %v398 = vld [vmem:[%s4 + $0x30] sm:$0xff]
      %v399 = vld [vmem:[%s4 + $0x38] sm:$0xff]
      %v400 = vld [vmem:[%s4 + $0x40] sm:$0xff]
      %v401 = vld [vmem:[%s4 + $0x48] sm:$0xff]
      %v402 = vld [vmem:[%s4 + $0x50] sm:$0xff]
      %v403 = vld [vmem:[%s4 + $0x58] sm:$0xff]
      %405 = vset.pattern.permute.xlu0 0
      %406 = vperm.xlu0 %405, %v392
      %v407 = vpop.permute.xlu0 %406
      %410 = vset.pattern.permute.xlu0 0
      %411 = vperm.xlu0 %410, %v393
      %v412 = vpop.permute.xlu0 %411
      %415 = vset.pattern.permute.xlu0 0
      %416 = vperm.xlu0 %415, %v394
      %v417 = vpop.permute.xlu0 %416
      %420 = vset.pattern.permute.xlu0 0
      %421 = vperm.xlu0 %420, %v395
      %v422 = vpop.permute.xlu0 %421
      %425 = vset.pattern.permute.xlu0 0
      %426 = vperm.xlu0 %425, %v396
      %v427 = vpop.permute.xlu0 %426
      %430 = vset.pattern.permute.xlu0 0
      %431 = vperm.xlu0 %430, %v397
      %v432 = vpop.permute.xlu0 %431
      %435 = vset.pattern.permute.xlu0 0
      %436 = vperm.xlu0 %435, %v398
      %v437 = vpop.permute.xlu0 %436
      %440 = vset.pattern.permute.xlu0 0
      %441 = vperm.xlu0 %440, %v399
      %v442 = vpop.permute.xlu0 %441
      %445 = vset.pattern.permute.xlu0 0
      %446 = vperm.xlu0 %445, %v400
      %v447 = vpop.permute.xlu0 %446
      %450 = vset.pattern.permute.xlu0 0
      %451 = vperm.xlu0 %450, %v401
      %v452 = vpop.permute.xlu0 %451
      %455 = vset.pattern.permute.xlu0 0
      %456 = vperm.xlu0 %455, %v402
      %v457 = vpop.permute.xlu0 %456
      %460 = vset.pattern.permute.xlu0 0
      %461 = vperm.xlu0 %460, %v403
      %v462 = vpop.permute.xlu0 %461
      %v472 = vunpack.c.l.b16 %v324
      %v473 = vunpack.c.l.b16 %v325
      %v474 = vunpack.c.l.b16 %v326
      %v475 = vunpack.c.l.b16 %v327
      %v476 = vunpack.c.l.b16 %v328
      %v477 = vunpack.c.l.b16 %v329
      %v478 = vunpack.c.l.b16 %v330
      %v479 = vunpack.c.l.b16 %v331
      %v480 = vpack.c.b16 %v473, %v472
      %v481 = vpack.c.b16 %v475, %v474
      %v482 = vpack.c.b16 %v477, %v476
      %v483 = vpack.c.b16 %v479, %v478
      %v496 = vunpack.c.l.b16 %v312
      %v497 = vunpack.c.l.b16 %v313
      %v498 = vunpack.c.l.b16 %v314
      %v499 = vunpack.c.l.b16 %v315
      %v500 = vunpack.c.l.b16 %v316
      %v501 = vunpack.c.l.b16 %v317
      %v502 = vunpack.c.l.b16 %v318
      %v503 = vunpack.c.l.b16 %v319
      %v504 = vunpack.c.l.b16 %v320
      %v505 = vunpack.c.l.b16 %v321
      %v506 = vunpack.c.l.b16 %v322
      %v507 = vunpack.c.l.b16 %v323
      %v508 = vpack.c.b16 %v497, %v496
      %v509 = vpack.c.b16 %v499, %v498
      %v510 = vpack.c.b16 %v501, %v500
      %v511 = vpack.c.b16 %v503, %v502
      %v512 = vpack.c.b16 %v505, %v504
      %v513 = vpack.c.b16 %v507, %v506
      %vm520 = vcmask 785408
      %v522 = vsel %vm520, %v480, 0
      %v525 = vsel %vm520, %v481, 0
      %v528 = vsel %vm520, %v482, 0
      %v531 = vsel %vm520, %v483, 0
      %533 = vmatpush.bf16.msra.mxu0 0
      %534 = vmatpush.bf16.msra.mxu0 0
      %535 = vmatpush.bf16.msra.mxu0 %v513
      %536 = vmatpush.bf16.msra.mxu0 %v512
      %537 = vmatpush.bf16.msra.mxu0 %v511
      %538 = vmatpush.bf16.msra.mxu0 %v510
      %539 = vmatpush.bf16.msra.mxu0 %v509
      %540 = vmatpush.bf16.msra.mxu0 %v508
      %541 = vmatmul.bf16.gmra.mxu0 %v522
      %v542 = vpop.f32.mrf.mxu0
      %v543 = vadd.f32 %v355, %v542
      %v544 = vpop.f32.mrf.mxu0
      %v545 = vadd.f32 %v360, %v544
      %546 = vmatmul.bf16.gmra.mxu0 %v525
      %v547 = vpop.f32.mrf.mxu0
      %v548 = vadd.f32 %v365, %v547
      %v549 = vpop.f32.mrf.mxu0
      %v550 = vadd.f32 %v370, %v549
      %551 = vmatmul.bf16.gmra.mxu0 %v528
      %v552 = vpop.f32.mrf.mxu0
      %v553 = vadd.f32 %v375, %v552
      %v554 = vpop.f32.mrf.mxu0
      %v555 = vadd.f32 %v380, %v554
      %556 = vmatmul.bf16.gmra.mxu0 %v531
      %v557 = vpop.f32.mrf.mxu0
      %v558 = vadd.f32 %v385, %v557
      %v559 = vpop.f32.mrf.mxu0
      %v560 = vadd.f32 %v390, %v559
      %561 = vdwg.mxu0
      %v562 = vtanh.pop %v543
      %v563 = vtanh.pop %v545
      %v564 = vtanh.pop %v548
      %v565 = vtanh.pop %v550
      %v566 = vtanh.pop %v553
      %v567 = vtanh.pop %v555
      %v568 = vtanh.pop %v558
      %v569 = vtanh.pop %v560
      %v570 = vpack.c.bf16 %v563, %v562
      %v571 = vpack.c.bf16 %v565, %v564
      %v572 = vpack.c.bf16 %v567, %v566
      %v573 = vpack.c.bf16 %v569, %v568
      %v586 = vunpack.c.l.b16 %v332
      %v587 = vunpack.c.l.b16 %v333
      %v588 = vunpack.c.l.b16 %v334
      %v589 = vunpack.c.l.b16 %v335
      %v590 = vunpack.c.l.b16 %v336
      %v591 = vunpack.c.l.b16 %v337
      %v592 = vunpack.c.l.b16 %v338
      %v593 = vunpack.c.l.b16 %v339
      %v594 = vunpack.c.l.b16 %v340
      %v595 = vunpack.c.l.b16 %v341
      %v596 = vunpack.c.l.b16 %v342
      %v597 = vunpack.c.l.b16 %v343
      %v598 = vpack.c.b16 %v587, %v586
      %v599 = vpack.c.b16 %v589, %v588
      %v600 = vpack.c.b16 %v591, %v590
      %v601 = vpack.c.b16 %v593, %v592
      %v602 = vpack.c.b16 %v595, %v594
      %v603 = vpack.c.b16 %v597, %v596
      %vm604 = vcmask 523264
      %v606 = vsel %vm604, %v598, 0
      %v609 = vsel %vm604, %v599, 0
      %v612 = vsel %vm604, %v600, 0
      %v615 = vsel %vm604, %v601, 0
      %v618 = vsel %vm604, %v602, 0
      %v621 = vsel %vm604, %v603, 0
      %623 = vmatpush.bf16.msra.mxu0 0
      %624 = vmatpush.bf16.msra.mxu0 0
      %625 = vmatpush.bf16.msra.mxu0 0
      %626 = vmatpush.bf16.msra.mxu0 0
      %627 = vmatpush.bf16.msra.mxu0 %v573
      %628 = vmatpush.bf16.msra.mxu0 %v572
      %629 = vmatpush.bf16.msra.mxu0 %v571
      %630 = vmatpush.bf16.msra.mxu0 %v570
      %631 = vmatmul.bf16.gmra.mxu0 %v606
      %v632 = vpop.f32.mrf.mxu0
      %v633 = vadd.f32 %v407, %v632
      %v634 = vpop.f32.mrf.mxu0
      %v635 = vadd.f32 %v412, %v634
      %636 = vmatmul.bf16.gmra.mxu0 %v609
      %v637 = vpop.f32.mrf.mxu0
      %v638 = vadd.f32 %v417, %v637
      %v639 = vpop.f32.mrf.mxu0
      %v640 = vadd.f32 %v422, %v639
      %641 = vmatmul.bf16.gmra.mxu0 %v612
      %v642 = vpop.f32.mrf.mxu0
      %v643 = vadd.f32 %v427, %v642
      %v644 = vpop.f32.mrf.mxu0
      %v645 = vadd.f32 %v432, %v644
      %646 = vmatmul.bf16.gmra.mxu0 %v615
      %v647 = vpop.f32.mrf.mxu0
      %v648 = vadd.f32 %v437, %v647
      %v649 = vpop.f32.mrf.mxu0
      %v650 = vadd.f32 %v442, %v649
      %651 = vmatmul.bf16.gmra.mxu0 %v618
      %v652 = vpop.f32.mrf.mxu0
      %v653 = vadd.f32 %v447, %v652
      %v654 = vpop.f32.mrf.mxu0
      %v655 = vadd.f32 %v452, %v654
      %656 = vmatmul.bf16.gmra.mxu0 %v621
      %v657 = vpop.f32.mrf.mxu0
      %v658 = vadd.f32 %v457, %v657
      %v659 = vpop.f32.mrf.mxu0
      %v660 = vadd.f32 %v462, %v659
      %661 = vdwg.mxu0
      %v662 = vld [vmem:[#allocation2] sm:$0xff]
      %v663 = vld [vmem:[#allocation2 + $0x8] sm:$0xff]
      %v664 = vld [vmem:[#allocation2 + $0x10] sm:$0xff]
      %v665 = vld [vmem:[#allocation2 + $0x18] sm:$0xff]
      %v666 = vld [vmem:[#allocation2 + $0x20] sm:$0xff]
      %v667 = vld [vmem:[#allocation2 + $0x28] sm:$0xff]
      %v668 = vld [vmem:[#allocation2 + $0x30] sm:$0xff]
      %v669 = vld [vmem:[#allocation2 + $0x38] sm:$0xff]
      %v670 = vld [vmem:[#allocation2 + $0x40] sm:$0xff]
      %v671 = vld [vmem:[#allocation2 + $0x48] sm:$0xff]
      %v672 = vld [vmem:[#allocation2 + $0x50] sm:$0xff]
      %v673 = vld [vmem:[#allocation2 + $0x58] sm:$0xff]
      %vm674 = vcmask 130048
      %v675 = vsel %vm674, %v633, -inf
      %676 = vmax.xlane.f32.xlu0 %v675
      %v677 = vpop.xlane.xlu0 %676
      %v678 = vsel %vm674, %v635, -inf
      %679 = vmax.xlane.f32.xlu0 %v678
      %v680 = vpop.xlane.xlu0 %679
      %v681 = vsel %vm674, %v638, -inf
      %682 = vmax.xlane.f32.xlu0 %v681
      %v683 = vpop.xlane.xlu0 %682
      %v684 = vsel %vm674, %v640, -inf
      %685 = vmax.xlane.f32.xlu0 %v684
      %v686 = vpop.xlane.xlu0 %685
      %v687 = vsel %vm674, %v643, -inf
      %688 = vmax.xlane.f32.xlu0 %v687
      %v689 = vpop.xlane.xlu0 %688
      %v690 = vsel %vm674, %v645, -inf
      %691 = vmax.xlane.f32.xlu0 %v690
      %v692 = vpop.xlane.xlu0 %691
      %v693 = vsel %vm674, %v648, -inf
      %694 = vmax.xlane.f32.xlu0 %v693
      %v695 = vpop.xlane.xlu0 %694
      %v696 = vsel %vm674, %v650, -inf
      %697 = vmax.xlane.f32.xlu0 %v696
      %v698 = vpop.xlane.xlu0 %697
      %v699 = vsel %vm674, %v653, -inf
      %700 = vmax.xlane.f32.xlu0 %v699
      %v701 = vpop.xlane.xlu0 %700
      %v702 = vsel %vm674, %v655, -inf
      %703 = vmax.xlane.f32.xlu0 %v702
      %v704 = vpop.xlane.xlu0 %703
      %v705 = vsel %vm674, %v658, -inf
      %706 = vmax.xlane.f32.xlu0 %v705
      %v707 = vpop.xlane.xlu0 %706
      %v708 = vsel %vm674, %v660, -inf
      %709 = vmax.xlane.f32.xlu0 %v708
      %v710 = vpop.xlane.xlu0 %709
      %v711 = vmax.f32 %v662, %v677
      %v712 = vmax.f32 %v663, %v680
      %v713 = vmax.f32 %v664, %v683
      %v714 = vmax.f32 %v665, %v686
      %v715 = vmax.f32 %v666, %v689
      %v716 = vmax.f32 %v667, %v692
      %v717 = vmax.f32 %v668, %v695
      %v718 = vmax.f32 %v669, %v698
      %v719 = vmax.f32 %v670, %v701
      %v720 = vmax.f32 %v671, %v704
      %v721 = vmax.f32 %v672, %v707
      %v722 = vmax.f32 %v673, %v710
      %v723 = vsub.f32 %v662, %v711
      %v724 = vsub.f32 %v663, %v712
      %v725 = vsub.f32 %v664, %v713
      %v726 = vsub.f32 %v665, %v714
      %v727 = vsub.f32 %v666, %v715
      %v728 = vsub.f32 %v667, %v716
      %v729 = vsub.f32 %v668, %v717
      %v730 = vsub.f32 %v669, %v718
      %v731 = vsub.f32 %v670, %v719
      %v732 = vsub.f32 %v671, %v720
      %v733 = vsub.f32 %v672, %v721
      %v734 = vsub.f32 %v673, %v722
      %v735 = vmul.f32 %v723, 1.442695
      %v736 = vpow.pop %v735
      %v737 = vmul.f32 %v724, 1.442695
      %v738 = vpow.pop %v737
      %v739 = vmul.f32 %v725, 1.442695
      %v740 = vpow.pop %v739
      %v741 = vmul.f32 %v726, 1.442695
      %v742 = vpow.pop %v741
      %v743 = vmul.f32 %v727, 1.442695
      %v744 = vpow.pop %v743
      %v745 = vmul.f32 %v728, 1.442695
      %v746 = vpow.pop %v745
      %v747 = vmul.f32 %v729, 1.442695
      %v748 = vpow.pop %v747
      %v749 = vmul.f32 %v730, 1.442695
      %v750 = vpow.pop %v749
      %v751 = vmul.f32 %v731, 1.442695
      %v752 = vpow.pop %v751
      %v753 = vmul.f32 %v732, 1.442695
      %v754 = vpow.pop %v753
      %v755 = vmul.f32 %v733, 1.442695
      %v756 = vpow.pop %v755
      %v757 = vmul.f32 %v734, 1.442695
      %v758 = vpow.pop %v757
      %760 = vset.pattern.permute.xlu0 0
      %761 = vperm.xlu0 %760, %v711
      %v762 = vpop.permute.xlu0 %761
      %765 = vset.pattern.permute.xlu0 0
      %766 = vperm.xlu0 %765, %v712
      %v767 = vpop.permute.xlu0 %766
      %770 = vset.pattern.permute.xlu0 0
      %771 = vperm.xlu0 %770, %v713
      %v772 = vpop.permute.xlu0 %771
      %775 = vset.pattern.permute.xlu0 0
      %776 = vperm.xlu0 %775, %v714
      %v777 = vpop.permute.xlu0 %776
      %780 = vset.pattern.permute.xlu0 0
      %781 = vperm.xlu0 %780, %v715
      %v782 = vpop.permute.xlu0 %781
      %785 = vset.pattern.permute.xlu0 0
      %786 = vperm.xlu0 %785, %v716
      %v787 = vpop.permute.xlu0 %786
      %790 = vset.pattern.permute.xlu0 0
      %791 = vperm.xlu0 %790, %v717
      %v792 = vpop.permute.xlu0 %791
      %795 = vset.pattern.permute.xlu0 0
      %796 = vperm.xlu0 %795, %v718
      %v797 = vpop.permute.xlu0 %796
      %800 = vset.pattern.permute.xlu0 0
      %801 = vperm.xlu0 %800, %v719
      %v802 = vpop.permute.xlu0 %801
      %805 = vset.pattern.permute.xlu0 0
      %806 = vperm.xlu0 %805, %v720
      %v807 = vpop.permute.xlu0 %806
      %810 = vset.pattern.permute.xlu0 0
      %811 = vperm.xlu0 %810, %v721
      %v812 = vpop.permute.xlu0 %811
      %815 = vset.pattern.permute.xlu0 0
      %816 = vperm.xlu0 %815, %v722
      %v817 = vpop.permute.xlu0 %816
      %v819 = vsub.f32 %v633, %v762
      %v820 = vsub.f32 %v635, %v767
      %v821 = vsub.f32 %v638, %v772
      %v822 = vsub.f32 %v640, %v777
      %v823 = vsub.f32 %v643, %v782
      %v824 = vsub.f32 %v645, %v787
      %v825 = vsub.f32 %v648, %v792
      %v826 = vsub.f32 %v650, %v797
      %v827 = vsub.f32 %v653, %v802
      %v828 = vsub.f32 %v655, %v807
      %v829 = vsub.f32 %v658, %v812
      %v830 = vsub.f32 %v660, %v817
      %v831 = vmul.f32 %v819, 1.442695
      %v832 = vpow.pop %v831
      %v833 = vmul.f32 %v820, 1.442695
      %v834 = vpow.pop %v833
      %v835 = vmul.f32 %v821, 1.442695
      %v836 = vpow.pop %v835
      %v837 = vmul.f32 %v822, 1.442695
      %v838 = vpow.pop %v837
      %v839 = vmul.f32 %v823, 1.442695
      %v840 = vpow.pop %v839
      %v841 = vmul.f32 %v824, 1.442695
      %v842 = vpow.pop %v841
      %v843 = vmul.f32 %v825, 1.442695
      %v844 = vpow.pop %v843
      %v845 = vmul.f32 %v826, 1.442695
      %v846 = vpow.pop %v845
      %v847 = vmul.f32 %v827, 1.442695
      %v848 = vpow.pop %v847
      %v849 = vmul.f32 %v828, 1.442695
      %v850 = vpow.pop %v849
      %v851 = vmul.f32 %v829, 1.442695
      %v852 = vpow.pop %v851
      %v853 = vmul.f32 %v830, 1.442695
      %v854 = vpow.pop %v853
      %v855 = vmul.f32 %v832, %v300
      %v856 = vmul.f32 %v834, %v301
      %v857 = vmul.f32 %v836, %v302
      %v858 = vmul.f32 %v838, %v303
      %v859 = vmul.f32 %v840, %v304
      %v860 = vmul.f32 %v842, %v305
      %v861 = vmul.f32 %v844, %v306
      %v862 = vmul.f32 %v846, %v307
      %v863 = vmul.f32 %v848, %v308
      %v864 = vmul.f32 %v850, %v309
      %v865 = vmul.f32 %v852, %v310
      %v866 = vmul.f32 %v854, %v311
      %v867 = vld [vmem:[#allocation3] sm:$0xff]
      %v868 = vld [vmem:[#allocation3 + $0x8] sm:$0xff]
      %v869 = vld [vmem:[#allocation3 + $0x10] sm:$0xff]
      %v870 = vld [vmem:[#allocation3 + $0x18] sm:$0xff]
      %v871 = vld [vmem:[#allocation3 + $0x20] sm:$0xff]
      %v872 = vld [vmem:[#allocation3 + $0x28] sm:$0xff]
      %v873 = vld [vmem:[#allocation3 + $0x30] sm:$0xff]
      %v874 = vld [vmem:[#allocation3 + $0x38] sm:$0xff]
      %v875 = vld [vmem:[#allocation3 + $0x40] sm:$0xff]
      %v876 = vld [vmem:[#allocation3 + $0x48] sm:$0xff]
      %v877 = vld [vmem:[#allocation3 + $0x50] sm:$0xff]
      %v878 = vld [vmem:[#allocation3 + $0x58] sm:$0xff]
      %v879 = vmul.f32 %v736, %v867
      %v880 = vmul.f32 %v738, %v868
      %v881 = vmul.f32 %v740, %v869
      %v882 = vmul.f32 %v742, %v870
      %v883 = vmul.f32 %v744, %v871
      %v884 = vmul.f32 %v746, %v872
      %v885 = vmul.f32 %v748, %v873
      %v886 = vmul.f32 %v750, %v874
      %v887 = vmul.f32 %v752, %v875
      %v888 = vmul.f32 %v754, %v876
      %v889 = vmul.f32 %v756, %v877
      %v890 = vmul.f32 %v758, %v878
      %v891 = vsel %vm674, %v832, 0.0
      %892 = vadd.xlane.f32.xlu0 %v891
      %v893 = vpop.xlane.xlu0 %892
      %v894 = vsel %vm674, %v834, 0.0
      %895 = vadd.xlane.f32.xlu0 %v894
      %v896 = vpop.xlane.xlu0 %895
      %v897 = vsel %vm674, %v836, 0.0
      %898 = vadd.xlane.f32.xlu0 %v897
      %v899 = vpop.xlane.xlu0 %898
      %v900 = vsel %vm674, %v838, 0.0
      %901 = vadd.xlane.f32.xlu0 %v900
      %v902 = vpop.xlane.xlu0 %901
      %v903 = vsel %vm674, %v840, 0.0
      %904 = vadd.xlane.f32.xlu0 %v903
      %v905 = vpop.xlane.xlu0 %904
      %v906 = vsel %vm674, %v842, 0.0
      %907 = vadd.xlane.f32.xlu0 %v906
      %v908 = vpop.xlane.xlu0 %907
      %v909 = vsel %vm674, %v844, 0.0
      %910 = vadd.xlane.f32.xlu0 %v909
      %v911 = vpop.xlane.xlu0 %910
      %v912 = vsel %vm674, %v846, 0.0
      %913 = vadd.xlane.f32.xlu0 %v912
      %v914 = vpop.xlane.xlu0 %913
      %v915 = vsel %vm674, %v848, 0.0
      %916 = vadd.xlane.f32.xlu0 %v915
      %v917 = vpop.xlane.xlu0 %916
      %v918 = vsel %vm674, %v850, 0.0
      %919 = vadd.xlane.f32.xlu0 %v918
      %v920 = vpop.xlane.xlu0 %919
      %v921 = vsel %vm674, %v852, 0.0
      %922 = vadd.xlane.f32.xlu0 %v921
      %v923 = vpop.xlane.xlu0 %922
      %v924 = vsel %vm674, %v854, 0.0
      %925 = vadd.xlane.f32.xlu0 %v924
      %v926 = vpop.xlane.xlu0 %925
      %v927 = vadd.f32 %v879, %v893
      %v928 = vadd.f32 %v880, %v896
      %v929 = vadd.f32 %v881, %v899
      %v930 = vadd.f32 %v882, %v902
      %v931 = vadd.f32 %v883, %v905
      %v932 = vadd.f32 %v884, %v908
      %v933 = vadd.f32 %v885, %v911
      %v934 = vadd.f32 %v886, %v914
      %v935 = vadd.f32 %v887, %v917
      %v936 = vadd.f32 %v888, %v920
      %v937 = vadd.f32 %v889, %v923
      %v938 = vadd.f32 %v890, %v926
      %vm939 = vcmask 7168
      %940 = vst.msk [vmem:[#allocation3] sm:$0xff] %vm939, %v927
      %941 = vst.msk [vmem:[#allocation3 + $0x8] sm:$0xff] %vm939, %v928
      %942 = vst.msk [vmem:[#allocation3 + $0x10] sm:$0xff] %vm939, %v929
      %943 = vst.msk [vmem:[#allocation3 + $0x18] sm:$0xff] %vm939, %v930
      %944 = vst.msk [vmem:[#allocation3 + $0x20] sm:$0xff] %vm939, %v931
      %945 = vst.msk [vmem:[#allocation3 + $0x28] sm:$0xff] %vm939, %v932
      %946 = vst.msk [vmem:[#allocation3 + $0x30] sm:$0xff] %vm939, %v933
      %947 = vst.msk [vmem:[#allocation3 + $0x38] sm:$0xff] %vm939, %v934
      %948 = vst.msk [vmem:[#allocation3 + $0x40] sm:$0xff] %vm939, %v935
      %949 = vst.msk [vmem:[#allocation3 + $0x48] sm:$0xff] %vm939, %v936
      %950 = vst.msk [vmem:[#allocation3 + $0x50] sm:$0xff] %vm939, %v937
      %951 = vst.msk [vmem:[#allocation3 + $0x58] sm:$0xff] %vm939, %v938
      %v952 = vld [vmem:[#allocation4] sm:$0xff]
      %v953 = vld [vmem:[#allocation4 + $0x8] sm:$0xff]
      %v954 = vld [vmem:[#allocation4 + $0x10] sm:$0xff]
      %v955 = vld [vmem:[#allocation4 + $0x18] sm:$0xff]
      %v956 = vld [vmem:[#allocation4 + $0x20] sm:$0xff]
      %v957 = vld [vmem:[#allocation4 + $0x28] sm:$0xff]
      %v958 = vld [vmem:[#allocation4 + $0x30] sm:$0xff]
      %v959 = vld [vmem:[#allocation4 + $0x38] sm:$0xff]
      %v960 = vld [vmem:[#allocation4 + $0x40] sm:$0xff]
      %v961 = vld [vmem:[#allocation4 + $0x48] sm:$0xff]
      %v962 = vld [vmem:[#allocation4 + $0x50] sm:$0xff]
      %v963 = vld [vmem:[#allocation4 + $0x58] sm:$0xff]
      %v964 = vmul.f32 %v736, %v952
      %v965 = vmul.f32 %v738, %v953
      %v966 = vmul.f32 %v740, %v954
      %v967 = vmul.f32 %v742, %v955
      %v968 = vmul.f32 %v744, %v956
      %v969 = vmul.f32 %v746, %v957
      %v970 = vmul.f32 %v748, %v958
      %v971 = vmul.f32 %v750, %v959
      %v972 = vmul.f32 %v752, %v960
      %v973 = vmul.f32 %v754, %v961
      %v974 = vmul.f32 %v756, %v962
      %v975 = vmul.f32 %v758, %v963
      %v976 = vsel %vm674, %v855, 0.0
      %977 = vadd.xlane.f32.xlu0 %v976
      %v978 = vpop.xlane.xlu0 %977
      %v979 = vsel %vm674, %v856, 0.0
      %980 = vadd.xlane.f32.xlu0 %v979
      %v981 = vpop.xlane.xlu0 %980
      %v982 = vsel %vm674, %v857, 0.0
      %983 = vadd.xlane.f32.xlu0 %v982
      %v984 = vpop.xlane.xlu0 %983
      %v985 = vsel %vm674, %v858, 0.0
      %986 = vadd.xlane.f32.xlu0 %v985
      %v987 = vpop.xlane.xlu0 %986
      %v988 = vsel %vm674, %v859, 0.0
      %989 = vadd.xlane.f32.xlu0 %v988
      %v990 = vpop.xlane.xlu0 %989
      %v991 = vsel %vm674, %v860, 0.0
      %992 = vadd.xlane.f32.xlu0 %v991
      %v993 = vpop.xlane.xlu0 %992
      %v994 = vsel %vm674, %v861, 0.0
      %995 = vadd.xlane.f32.xlu0 %v994
      %v996 = vpop.xlane.xlu0 %995
      %v997 = vsel %vm674, %v862, 0.0
      %998 = vadd.xlane.f32.xlu0 %v997
      %v999 = vpop.xlane.xlu0 %998
      %v1000 = vsel %vm674, %v863, 0.0
      %1001 = vadd.xlane.f32.xlu0 %v1000
      %v1002 = vpop.xlane.xlu0 %1001
      %v1003 = vsel %vm674, %v864, 0.0
      %1004 = vadd.xlane.f32.xlu0 %v1003
      %v1005 = vpop.xlane.xlu0 %1004
      %v1006 = vsel %vm674, %v865, 0.0
      %1007 = vadd.xlane.f32.xlu0 %v1006
      %v1008 = vpop.xlane.xlu0 %1007
      %v1009 = vsel %vm674, %v866, 0.0
      %1010 = vadd.xlane.f32.xlu0 %v1009
      %v1011 = vpop.xlane.xlu0 %1010
      %v1012 = vadd.f32 %v964, %v978
      %v1013 = vadd.f32 %v965, %v981
      %v1014 = vadd.f32 %v966, %v984
      %v1015 = vadd.f32 %v967, %v987
      %v1016 = vadd.f32 %v968, %v990
      %v1017 = vadd.f32 %v969, %v993
      %v1018 = vadd.f32 %v970, %v996
      %v1019 = vadd.f32 %v971, %v999
      %v1020 = vadd.f32 %v972, %v1002
      %v1021 = vadd.f32 %v973, %v1005
      %v1022 = vadd.f32 %v974, %v1008
      %v1023 = vadd.f32 %v975, %v1011
      %1024 = vst.msk [vmem:[#allocation4] sm:$0xff] %vm939, %v1012
      %1025 = vst.msk [vmem:[#allocation4 + $0x8] sm:$0xff] %vm939, %v1013
      %1026 = vst.msk [vmem:[#allocation4 + $0x10] sm:$0xff] %vm939, %v1014
      %1027 = vst.msk [vmem:[#allocation4 + $0x18] sm:$0xff] %vm939, %v1015
      %1028 = vst.msk [vmem:[#allocation4 + $0x20] sm:$0xff] %vm939, %v1016
      %1029 = vst.msk [vmem:[#allocation4 + $0x28] sm:$0xff] %vm939, %v1017
      %1030 = vst.msk [vmem:[#allocation4 + $0x30] sm:$0xff] %vm939, %v1018
      %1031 = vst.msk [vmem:[#allocation4 + $0x38] sm:$0xff] %vm939, %v1019
      %1032 = vst.msk [vmem:[#allocation4 + $0x40] sm:$0xff] %vm939, %v1020
      %1033 = vst.msk [vmem:[#allocation4 + $0x48] sm:$0xff] %vm939, %v1021
      %1034 = vst.msk [vmem:[#allocation4 + $0x50] sm:$0xff] %vm939, %v1022
      %1035 = vst.msk [vmem:[#allocation4 + $0x58] sm:$0xff] %vm939, %v1023
      %v1036 = vld [vmem:[#allocation5] sm:$0xff]
      %v1037 = vld [vmem:[#allocation5 + $0x8] sm:$0xff]
      %v1038 = vld [vmem:[#allocation5 + $0x10] sm:$0xff]
      %v1039 = vld [vmem:[#allocation5 + $0x18] sm:$0xff]
      %v1040 = vld [vmem:[#allocation5 + $0x20] sm:$0xff]
      %v1041 = vld [vmem:[#allocation5 + $0x28] sm:$0xff]
      %v1042 = vld [vmem:[#allocation5 + $0x30] sm:$0xff]
      %v1043 = vld [vmem:[#allocation5 + $0x38] sm:$0xff]
      %v1044 = vld [vmem:[#allocation5 + $0x40] sm:$0xff]
      %v1045 = vld [vmem:[#allocation5 + $0x48] sm:$0xff]
      %v1046 = vld [vmem:[#allocation5 + $0x50] sm:$0xff]
      %v1047 = vld [vmem:[#allocation5 + $0x58] sm:$0xff]
      %v1048 = vmul.f32 %v736, %v1036
      %v1049 = vmul.f32 %v738, %v1037
      %v1050 = vmul.f32 %v740, %v1038
      %v1051 = vmul.f32 %v742, %v1039
      %v1052 = vmul.f32 %v744, %v1040
      %v1053 = vmul.f32 %v746, %v1041
      %v1054 = vmul.f32 %v748, %v1042
      %v1055 = vmul.f32 %v750, %v1043
      %v1056 = vmul.f32 %v752, %v1044
      %v1057 = vmul.f32 %v754, %v1045
      %v1058 = vmul.f32 %v756, %v1046
      %v1059 = vmul.f32 %v758, %v1047
      %v1060 = vmul.f32 %v855, %v300
      %v1061 = vmul.f32 %v856, %v301
      %v1062 = vmul.f32 %v857, %v302
      %v1063 = vmul.f32 %v858, %v303
      %v1064 = vmul.f32 %v859, %v304
      %v1065 = vmul.f32 %v860, %v305
      %v1066 = vmul.f32 %v861, %v306
      %v1067 = vmul.f32 %v862, %v307
      %v1068 = vmul.f32 %v863, %v308
      %v1069 = vmul.f32 %v864, %v309
      %v1070 = vmul.f32 %v865, %v310
      %v1071 = vmul.f32 %v866, %v311
      %v1072 = vsel %vm674, %v1060, 0.0
      %1073 = vadd.xlane.f32.xlu0 %v1072
      %v1074 = vpop.xlane.xlu0 %1073
      %v1075 = vsel %vm674, %v1061, 0.0
      %1076 = vadd.xlane.f32.xlu0 %v1075
      %v1077 = vpop.xlane.xlu0 %1076
      %v1078 = vsel %vm674, %v1062, 0.0
      %1079 = vadd.xlane.f32.xlu0 %v1078
      %v1080 = vpop.xlane.xlu0 %1079
      %v1081 = vsel %vm674, %v1063, 0.0
      %1082 = vadd.xlane.f32.xlu0 %v1081
      %v1083 = vpop.xlane.xlu0 %1082
      %v1084 = vsel %vm674, %v1064, 0.0
      %1085 = vadd.xlane.f32.xlu0 %v1084
      %v1086 = vpop.xlane.xlu0 %1085
      %v1087 = vsel %vm674, %v1065, 0.0
      %1088 = vadd.xlane.f32.xlu0 %v1087
      %v1089 = vpop.xlane.xlu0 %1088
      %v1090 = vsel %vm674, %v1066, 0.0
      %1091 = vadd.xlane.f32.xlu0 %v1090
      %v1092 = vpop.xlane.xlu0 %1091
      %v1093 = vsel %vm674, %v1067, 0.0
      %1094 = vadd.xlane.f32.xlu0 %v1093
      %v1095 = vpop.xlane.xlu0 %1094
      %v1096 = vsel %vm674, %v1068, 0.0
      %1097 = vadd.xlane.f32.xlu0 %v1096
      %v1098 = vpop.xlane.xlu0 %1097
      %v1099 = vsel %vm674, %v1069, 0.0
      %1100 = vadd.xlane.f32.xlu0 %v1099
      %v1101 = vpop.xlane.xlu0 %1100
      %v1102 = vsel %vm674, %v1070, 0.0
      %1103 = vadd.xlane.f32.xlu0 %v1102
      %v1104 = vpop.xlane.xlu0 %1103
      %v1105 = vsel %vm674, %v1071, 0.0
      %1106 = vadd.xlane.f32.xlu0 %v1105
      %v1107 = vpop.xlane.xlu0 %1106
      %v1108 = vadd.f32 %v1048, %v1074
      %v1109 = vadd.f32 %v1049, %v1077
      %v1110 = vadd.f32 %v1050, %v1080
      %v1111 = vadd.f32 %v1051, %v1083
      %v1112 = vadd.f32 %v1052, %v1086
      %v1113 = vadd.f32 %v1053, %v1089
      %v1114 = vadd.f32 %v1054, %v1092
      %v1115 = vadd.f32 %v1055, %v1095
      %v1116 = vadd.f32 %v1056, %v1098
      %v1117 = vadd.f32 %v1057, %v1101
      %v1118 = vadd.f32 %v1058, %v1104
      %v1119 = vadd.f32 %v1059, %v1107
      %1120 = vst.msk [vmem:[#allocation5] sm:$0xff] %vm939, %v1108
      %1121 = vst.msk [vmem:[#allocation5 + $0x8] sm:$0xff] %vm939, %v1109
      %1122 = vst.msk [vmem:[#allocation5 + $0x10] sm:$0xff] %vm939, %v1110
      %1123 = vst.msk [vmem:[#allocation5 + $0x18] sm:$0xff] %vm939, %v1111
      %1124 = vst.msk [vmem:[#allocation5 + $0x20] sm:$0xff] %vm939, %v1112
      %1125 = vst.msk [vmem:[#allocation5 + $0x28] sm:$0xff] %vm939, %v1113
      %1126 = vst.msk [vmem:[#allocation5 + $0x30] sm:$0xff] %vm939, %v1114
      %1127 = vst.msk [vmem:[#allocation5 + $0x38] sm:$0xff] %vm939, %v1115
      %1128 = vst.msk [vmem:[#allocation5 + $0x40] sm:$0xff] %vm939, %v1116
      %1129 = vst.msk [vmem:[#allocation5 + $0x48] sm:$0xff] %vm939, %v1117
      %1130 = vst.msk [vmem:[#allocation5 + $0x50] sm:$0xff] %vm939, %v1118
      %1131 = vst.msk [vmem:[#allocation5 + $0x58] sm:$0xff] %vm939, %v1119
      %1132 = vst.msk [vmem:[#allocation2] sm:$0xff] %vm939, %v711
      %1133 = vst.msk [vmem:[#allocation2 + $0x8] sm:$0xff] %vm939, %v712
      %1134 = vst.msk [vmem:[#allocation2 + $0x10] sm:$0xff] %vm939, %v713
      %1135 = vst.msk [vmem:[#allocation2 + $0x18] sm:$0xff] %vm939, %v714
      %1136 = vst.msk [vmem:[#allocation2 + $0x20] sm:$0xff] %vm939, %v715
      %1137 = vst.msk [vmem:[#allocation2 + $0x28] sm:$0xff] %vm939, %v716
      %1138 = vst.msk [vmem:[#allocation2 + $0x30] sm:$0xff] %vm939, %v717
      %1139 = vst.msk [vmem:[#allocation2 + $0x38] sm:$0xff] %vm939, %v718
      %1140 = vst.msk [vmem:[#allocation2 + $0x40] sm:$0xff] %vm939, %v719
      %1141 = vst.msk [vmem:[#allocation2 + $0x48] sm:$0xff] %vm939, %v720
      %1142 = vst.msk [vmem:[#allocation2 + $0x50] sm:$0xff] %vm939, %v721
      %1143 = vst.msk [vmem:[#allocation2 + $0x58] sm:$0xff] %vm939, %v722
      // Predicated region
      $region45: #{attentive_stats_pool.1} parent=39 // pred_check
        %p1144 = pneg %p247
      $region46: #{attentive_stats_pool.1} parent=39 // pred_check_branch
        %1146 = sbr.rel (%p1144) target = $region48
      $region47: #{attentive_stats_pool.1} parent=39 // pred_region
        %v1147 = vld [vmem:[#allocation3] sm:$0xff]
        %v1148 = vld [vmem:[#allocation3 + $0x8] sm:$0xff]
        %v1149 = vld [vmem:[#allocation3 + $0x10] sm:$0xff]
        %v1150 = vld [vmem:[#allocation3 + $0x18] sm:$0xff]
        %v1151 = vld [vmem:[#allocation3 + $0x20] sm:$0xff]
        %v1152 = vld [vmem:[#allocation3 + $0x28] sm:$0xff]
        %v1153 = vld [vmem:[#allocation3 + $0x30] sm:$0xff]
        %v1154 = vld [vmem:[#allocation3 + $0x38] sm:$0xff]
        %v1155 = vld [vmem:[#allocation3 + $0x40] sm:$0xff]
        %v1156 = vld [vmem:[#allocation3 + $0x48] sm:$0xff]
        %v1157 = vld [vmem:[#allocation3 + $0x50] sm:$0xff]
        %v1158 = vld [vmem:[#allocation3 + $0x58] sm:$0xff]
        %v1159 = vrcp.pop %v1147
        %v1160 = vrcp.pop %v1148
        %v1161 = vrcp.pop %v1149
        %v1162 = vrcp.pop %v1150
        %v1163 = vrcp.pop %v1151
        %v1164 = vrcp.pop %v1152
        %v1165 = vrcp.pop %v1153
        %v1166 = vrcp.pop %v1154
        %v1167 = vrcp.pop %v1155
        %v1168 = vrcp.pop %v1156
        %v1169 = vrcp.pop %v1157
        %v1170 = vrcp.pop %v1158
        %v1171 = vld [vmem:[#allocation4] sm:$0xff]
        %v1172 = vld [vmem:[#allocation4 + $0x8] sm:$0xff]
        %v1173 = vld [vmem:[#allocation4 + $0x10] sm:$0xff]
        %v1174 = vld [vmem:[#allocation4 + $0x18] sm:$0xff]
        %v1175 = vld [vmem:[#allocation4 + $0x20] sm:$0xff]
        %v1176 = vld [vmem:[#allocation4 + $0x28] sm:$0xff]
        %v1177 = vld [vmem:[#allocation4 + $0x30] sm:$0xff]
        %v1178 = vld [vmem:[#allocation4 + $0x38] sm:$0xff]
        %v1179 = vld [vmem:[#allocation4 + $0x40] sm:$0xff]
        %v1180 = vld [vmem:[#allocation4 + $0x48] sm:$0xff]
        %v1181 = vld [vmem:[#allocation4 + $0x50] sm:$0xff]
        %v1182 = vld [vmem:[#allocation4 + $0x58] sm:$0xff]
        %v1183 = vmul.f32 %v1171, %v1159
        %v1184 = vmul.f32 %v1172, %v1160
        %v1185 = vmul.f32 %v1173, %v1161
        %v1186 = vmul.f32 %v1174, %v1162
        %v1187 = vmul.f32 %v1175, %v1163
        %v1188 = vmul.f32 %v1176, %v1164
        %v1189 = vmul.f32 %v1177, %v1165
        %v1190 = vmul.f32 %v1178, %v1166
        %v1191 = vmul.f32 %v1179, %v1167
        %v1192 = vmul.f32 %v1180, %v1168
        %v1193 = vmul.f32 %v1181, %v1169
        %v1194 = vmul.f32 %v1182, %v1170
        %v1195 = vld [vmem:[#allocation5] sm:$0xff]
        %v1196 = vld [vmem:[#allocation5 + $0x8] sm:$0xff]
        %v1197 = vld [vmem:[#allocation5 + $0x10] sm:$0xff]
        %v1198 = vld [vmem:[#allocation5 + $0x18] sm:$0xff]
        %v1199 = vld [vmem:[#allocation5 + $0x20] sm:$0xff]
        %v1200 = vld [vmem:[#allocation5 + $0x28] sm:$0xff]
        %v1201 = vld [vmem:[#allocation5 + $0x30] sm:$0xff]
        %v1202 = vld [vmem:[#allocation5 + $0x38] sm:$0xff]
        %v1203 = vld [vmem:[#allocation5 + $0x40] sm:$0xff]
        %v1204 = vld [vmem:[#allocation5 + $0x48] sm:$0xff]
        %v1205 = vld [vmem:[#allocation5 + $0x50] sm:$0xff]
        %v1206 = vld [vmem:[#allocation5 + $0x58] sm:$0xff]
        %v1207 = vmul.f32 %v1195, %v1159
        %v1208 = vmul.f32 %v1196, %v1160
        %v1209 = vmul.f32 %v1197, %v1161
        %v1210 = vmul.f32 %v1198, %v1162
        %v1211 = vmul.f32 %v1199, %v1163
        %v1212 = vmul.f32 %v1200, %v1164
        %v1213 = vmul.f32 %v1201, %v1165
        %v1214 = vmul.f32 %v1202, %v1166
        %v1215 = vmul.f32 %v1203, %v1167
        %v1216 = vmul.f32 %v1204, %v1168
        %v1217 = vmul.f32 %v1205, %v1169
        %v1218 = vmul.f32 %v1206, %v1170
        %v1219 = vmul.f32 %v1183, %v1183
        %v1220 = vmul.f32 %v1184, %v1184
        %v1221 = vmul.f32 %v1185, %v1185
        %v1222 = vmul.f32 %v1186, %v1186
        %v1223 = vmul.f32 %v1187, %v1187
        %v1224 = vmul.f32 %v1188, %v1188
        %v1225 = vmul.f32 %v1189, %v1189
        %v1226 = vmul.f32 %v1190, %v1190
        %v1227 = vmul.f32 %v1191, %v1191
        %v1228 = vmul.f32 %v1192, %v1192
        %v1229 = vmul.f32 %v1193, %v1193
        %v1230 = vmul.f32 %v1194, %v1194
        %v1231 = vsub.f32 %v1207, %v1219
        %v1232 = vsub.f32 %v1208, %v1220
        %v1233 = vsub.f32 %v1209, %v1221
        %v1234 = vsub.f32 %v1210, %v1222
        %v1235 = vsub.f32 %v1211, %v1223
        %v1236 = vsub.f32 %v1212, %v1224
        %v1237 = vsub.f32 %v1213, %v1225
        %v1238 = vsub.f32 %v1214, %v1226
        %v1239 = vsub.f32 %v1215, %v1227
        %v1240 = vsub.f32 %v1216, %v1228
        %v1241 = vsub.f32 %v1217, %v1229
        %v1242 = vsub.f32 %v1218, %v1230
        %v1243 = vmax.f32 %v1231, 1e-09
        %v1244 = vmax.f32 %v1232, 1e-09
        %v1245 = vmax.f32 %v1233, 1e-09
        %v1246 = vmax.f32 %v1234, 1e-09
        %v1247 = vmax.f32 %v1235, 1e-09
        %v1248 = vmax.f32 %v1236, 1e-09
        %v1249 = vmax.f32 %v1237, 1e-09
        %v1250 = vmax.f32 %v1238, 1e-09
        %v1251 = vmax.f32 %v1239, 1e-09
        %v1252 = vmax.f32 %v1240, 1e-09
        %v1253 = vmax.f32 %v1241, 1e-09
        %v1254 = vmax.f32 %v1242, 1e-09
        %v1255 = vrsqrt.pop %v1243
        %v1256 = vmul.f32 %v1255, %v1243
        %v1257 = vmul.f32 %v1256, %v1255
        %v1258 = vmul.f32 0.5, %v1257
        %v1259 = vsub.f32 1.5, %v1258
        %v1260 = vmul.f32 %v1255, %v1259
        %v1261 = vmul.f32 %v1243, %v1260
        %vm1262 = vcmp.eq.f32.partialorder %v1243, inf
        %v1263 = vsel %vm1262, %v1243, %v1261
        %vm1264 = vcmp.eq.f32.partialorder %v1243, 0.0
        %v1265 = vand.u32 %v1243, 2147483648
        %v1266 = vsel %vm1264, %v1265, %v1263
        %v1267 = vrsqrt.pop %v1244
        %v1268 = vmul.f32 %v1267, %v1244
        %v1269 = vmul.f32 %v1268, %v1267
        %v1270 = vmul.f32 0.5, %v1269
        %v1271 = vsub.f32 1.5, %v1270
        %v1272 = vmul.f32 %v1267, %v1271
        %v1273 = vmul.f32 %v1244, %v1272
        %vm1274 = vcmp.eq.f32.partialorder %v1244, inf
        %v1275 = vsel %vm1274, %v1244, %v1273
        %vm1276 = vcmp.eq.f32.partialorder %v1244, 0.0
        %v1277 = vand.u32 %v1244, 2147483648
        %v1278 = vsel %vm1276, %v1277, %v1275
        %v1279 = vrsqrt.pop %v1245
        %v1280 = vmul.f32 %v1279, %v1245
        %v1281 = vmul.f32 %v1280, %v1279
        %v1282 = vmul.f32 0.5, %v1281
        %v1283 = vsub.f32 1.5, %v1282
        %v1284 = vmul.f32 %v1279, %v1283
        %v1285 = vmul.f32 %v1245, %v1284
        %vm1286 = vcmp.eq.f32.partialorder %v1245, inf
        %v1287 = vsel %vm1286, %v1245, %v1285
        %vm1288 = vcmp.eq.f32.partialorder %v1245, 0.0
        %v1289 = vand.u32 %v1245, 2147483648
        %v1290 = vsel %vm1288, %v1289, %v1287
        %v1291 = vrsqrt.pop %v1246
        %v1292 = vmul.f32 %v1291, %v1246
        %v1293 = vmul.f32 %v1292, %v1291
        %v1294 = vmul.f32 0.5, %v1293
        %v1295 = vsub.f32 1.5, %v1294
        %v1296 = vmul.f32 %v1291, %v1295
        %v1297 = vmul.f32 %v1246, %v1296
        %vm1298 = vcmp.eq.f32.partialorder %v1246, inf
        %v1299 = vsel %vm1298, %v1246, %v1297
        %vm1300 = vcmp.eq.f32.partialorder %v1246, 0.0
        %v1301 = vand.u32 %v1246, 2147483648
        %v1302 = vsel %vm1300, %v1301, %v1299
        %v1303 = vrsqrt.pop %v1247
        %v1304 = vmul.f32 %v1303, %v1247
        %v1305 = vmul.f32 %v1304, %v1303
        %v1306 = vmul.f32 0.5, %v1305
        %v1307 = vsub.f32 1.5, %v1306
        %v1308 = vmul.f32 %v1303, %v1307
        %v1309 = vmul.f32 %v1247, %v1308
        %vm1310 = vcmp.eq.f32.partialorder %v1247, inf
        %v1311 = vsel %vm1310, %v1247, %v1309
        %vm1312 = vcmp.eq.f32.partialorder %v1247, 0.0
        %v1313 = vand.u32 %v1247, 2147483648
        %v1314 = vsel %vm1312, %v1313, %v1311
        %v1315 = vrsqrt.pop %v1248
        %v1316 = vmul.f32 %v1315, %v1248
        %v1317 = vmul.f32 %v1316, %v1315
        %v1318 = vmul.f32 0.5, %v1317
        %v1319 = vsub.f32 1.5, %v1318
        %v1320 = vmul.f32 %v1315, %v1319
        %v1321 = vmul.f32 %v1248, %v1320
        %vm1322 = vcmp.eq.f32.partialorder %v1248, inf
        %v1323 = vsel %vm1322, %v1248, %v1321
        %vm1324 = vcmp.eq.f32.partialorder %v1248, 0.0
        %v1325 = vand.u32 %v1248, 2147483648
        %v1326 = vsel %vm1324, %v1325, %v1323
        %v1327 = vrsqrt.pop %v1249
        %v1328 = vmul.f32 %v1327, %v1249
        %v1329 = vmul.f32 %v1328, %v1327
        %v1330 = vmul.f32 0.5, %v1329
        %v1331 = vsub.f32 1.5, %v1330
        %v1332 = vmul.f32 %v1327, %v1331
        %v1333 = vmul.f32 %v1249, %v1332
        %vm1334 = vcmp.eq.f32.partialorder %v1249, inf
        %v1335 = vsel %vm1334, %v1249, %v1333
        %vm1336 = vcmp.eq.f32.partialorder %v1249, 0.0
        %v1337 = vand.u32 %v1249, 2147483648
        %v1338 = vsel %vm1336, %v1337, %v1335
        %v1339 = vrsqrt.pop %v1250
        %v1340 = vmul.f32 %v1339, %v1250
        %v1341 = vmul.f32 %v1340, %v1339
        %v1342 = vmul.f32 0.5, %v1341
        %v1343 = vsub.f32 1.5, %v1342
        %v1344 = vmul.f32 %v1339, %v1343
        %v1345 = vmul.f32 %v1250, %v1344
        %vm1346 = vcmp.eq.f32.partialorder %v1250, inf
        %v1347 = vsel %vm1346, %v1250, %v1345
        %vm1348 = vcmp.eq.f32.partialorder %v1250, 0.0
        %v1349 = vand.u32 %v1250, 2147483648
        %v1350 = vsel %vm1348, %v1349, %v1347
        %v1351 = vrsqrt.pop %v1251
        %v1352 = vmul.f32 %v1351, %v1251
        %v1353 = vmul.f32 %v1352, %v1351
        %v1354 = vmul.f32 0.5, %v1353
        %v1355 = vsub.f32 1.5, %v1354
        %v1356 = vmul.f32 %v1351, %v1355
        %v1357 = vmul.f32 %v1251, %v1356
        %vm1358 = vcmp.eq.f32.partialorder %v1251, inf
        %v1359 = vsel %vm1358, %v1251, %v1357
        %vm1360 = vcmp.eq.f32.partialorder %v1251, 0.0
        %v1361 = vand.u32 %v1251, 2147483648
        %v1362 = vsel %vm1360, %v1361, %v1359
        %v1363 = vrsqrt.pop %v1252
        %v1364 = vmul.f32 %v1363, %v1252
        %v1365 = vmul.f32 %v1364, %v1363
        %v1366 = vmul.f32 0.5, %v1365
        %v1367 = vsub.f32 1.5, %v1366
        %v1368 = vmul.f32 %v1363, %v1367
        %v1369 = vmul.f32 %v1252, %v1368
        %vm1370 = vcmp.eq.f32.partialorder %v1252, inf
        %v1371 = vsel %vm1370, %v1252, %v1369
        %vm1372 = vcmp.eq.f32.partialorder %v1252, 0.0
        %v1373 = vand.u32 %v1252, 2147483648
        %v1374 = vsel %vm1372, %v1373, %v1371
        %v1375 = vrsqrt.pop %v1253
        %v1376 = vmul.f32 %v1375, %v1253
        %v1377 = vmul.f32 %v1376, %v1375
        %v1378 = vmul.f32 0.5, %v1377
        %v1379 = vsub.f32 1.5, %v1378
        %v1380 = vmul.f32 %v1375, %v1379
        %v1381 = vmul.f32 %v1253, %v1380
        %vm1382 = vcmp.eq.f32.partialorder %v1253, inf
        %v1383 = vsel %vm1382, %v1253, %v1381
        %vm1384 = vcmp.eq.f32.partialorder %v1253, 0.0
        %v1385 = vand.u32 %v1253, 2147483648
        %v1386 = vsel %vm1384, %v1385, %v1383
        %v1387 = vrsqrt.pop %v1254
        %v1388 = vmul.f32 %v1387, %v1254
        %v1389 = vmul.f32 %v1388, %v1387
        %v1390 = vmul.f32 0.5, %v1389
        %v1391 = vsub.f32 1.5, %v1390
        %v1392 = vmul.f32 %v1387, %v1391
        %v1393 = vmul.f32 %v1254, %v1392
        %vm1394 = vcmp.eq.f32.partialorder %v1254, inf
        %v1395 = vsel %vm1394, %v1254, %v1393
        %vm1396 = vcmp.eq.f32.partialorder %v1254, 0.0
        %v1397 = vand.u32 %v1254, 2147483648
        %v1398 = vsel %vm1396, %v1397, %v1395
        %1399 = vxpose.xlu0.b32.start [1/16] %v1183, 128
        %1400 = vxpose.xlu0.b32.cont [2/16] %v1184, 128
        %1401 = vxpose.xlu0.b32.cont [3/16] %v1185, 128
        %1402 = vxpose.xlu0.b32.cont [4/16] %v1186, 128
        %1403 = vxpose.xlu0.b32.cont [5/16] %v1187, 128
        %1404 = vxpose.xlu0.b32.cont [6/16] %v1188, 128
        %1405 = vxpose.xlu0.b32.cont [7/16] %v1189, 128
        %1406 = vxpose.xlu0.b32.cont [8/16] %v1190, 128
        %1407 = vxpose.xlu0.b32.cont [9/16] %v1191, 128
        %1408 = vxpose.xlu0.b32.cont [10/16] %v1192, 128
        %1409 = vxpose.xlu0.b32.cont [11/16] %v1193, 128
        %1410 = vxpose.xlu0.b32.cont [12/16] %v1194, 128
        %1411 = vxpose.xlu0.b32.cont [13/16] 0.0, 128
        %1412 = vxpose.xlu0.b32.cont [14/16] 0.0, 128
        %1413 = vxpose.xlu0.b32.cont [15/16] 0.0, 128
        %1414 = vxpose.xlu0.b32.end [16/16] 0.0, 128
        %v1415 = vpop.trf.xlu0
        %v1416 = vpop.trf.xlu0
        %v1417 = vpop.trf.xlu0
        %v1418 = vpop.trf.xlu0
        %v1419 = vpop.trf.xlu0
        %v1420 = vpop.trf.xlu0
        %v1421 = vpop.trf.xlu0
        %v1422 = vpop.trf.xlu0
        %v1423 = vpop.trf.xlu0
        %v1424 = vpop.trf.xlu0
        %v1425 = vpop.trf.xlu0
        %v1426 = vpop.trf.xlu0
        %v1427 = vpop.trf.xlu0
        %v1428 = vpop.trf.xlu0
        %v1429 = vpop.trf.xlu0
        %v1430 = vpop.trf.xlu0
        %1431 = vxpose.xlu0.b32.start [1/16] %v1266, 128
        %1432 = vxpose.xlu0.b32.cont [2/16] %v1278, 128
        %1433 = vxpose.xlu0.b32.cont [3/16] %v1290, 128
        %1434 = vxpose.xlu0.b32.cont [4/16] %v1302, 128
        %1435 = vxpose.xlu0.b32.cont [5/16] %v1314, 128
        %1436 = vxpose.xlu0.b32.cont [6/16] %v1326, 128
        %1437 = vxpose.xlu0.b32.cont [7/16] %v1338, 128
        %1438 = vxpose.xlu0.b32.cont [8/16] %v1350, 128
        %1439 = vxpose.xlu0.b32.cont [9/16] %v1362, 128
        %1440 = vxpose.xlu0.b32.cont [10/16] %v1374, 128
        %1441 = vxpose.xlu0.b32.cont [11/16] %v1386, 128
        %1442 = vxpose.xlu0.b32.cont [12/16] %v1398, 128
        %1443 = vxpose.xlu0.b32.cont [13/16] 0.0, 128
        %1444 = vxpose.xlu0.b32.cont [14/16] 0.0, 128
        %1445 = vxpose.xlu0.b32.cont [15/16] 0.0, 128
        %1446 = vxpose.xlu0.b32.end [16/16] 0.0, 128
        %v1447 = vpop.trf.xlu0
        %v1448 = vpop.trf.xlu0
        %v1449 = vpop.trf.xlu0
        %v1450 = vpop.trf.xlu0
        %v1451 = vpop.trf.xlu0
        %v1452 = vpop.trf.xlu0
        %v1453 = vpop.trf.xlu0
        %v1454 = vpop.trf.xlu0
        %v1455 = vpop.trf.xlu0
        %v1456 = vpop.trf.xlu0
        %v1457 = vpop.trf.xlu0
        %v1458 = vpop.trf.xlu0
        %v1459 = vpop.trf.xlu0
        %v1460 = vpop.trf.xlu0
        %v1461 = vpop.trf.xlu0
        %v1462 = vpop.trf.xlu0
        %1464 = vrot.lane.b32.xlu0 %v1447, 96
        %v1465 = vpop.permute.xlu0 %1464
        %v1467 = vsel %vm520, %v1415, %v1465
        %v1469 = vrot.slane %v1465, 7
        %vm1470 = vcmask 1040384
        %v1471 = vsel %vm1470, %v1467, %v1469
        %v1473 = vlaneseq
        %vm1474 = vcmp.ge.s32.totalorder %v1473, 0
        %vm1475 = vcmp.lt.s32.totalorder %v1473, 192
        %vm1476 = vmand %vm1474, %vm1475
        %1477 = vst.msk [vmem:[%s245] sm:$0x3] %vm1476, %v1471
      $region48: #{attentive_stats_pool.1} parent=39 // pred_fallthru
        _
      %p1478 = scmp.lt.s32.totalorder %s20, 1
      %s1479 = scalar_select %p1478, %s20, 1
      %s1480 = smul.addr %s1479, 2
      %s1481 = scalar_lea.vmem %s5, %s1480
      // Predicated region
      $region49: #{attentive_stats_pool.1} parent=39 // pred_check
        %p1482 = pneg %p158
      $region50: #{attentive_stats_pool.1} parent=39 // pred_check_branch
        %1484 = sbr.rel (%p1482) target = $region52
      $region51: #{attentive_stats_pool.1} parent=39 // pred_region
        _
      $region52: #{attentive_stats_pool.1} parent=39 // pred_fallthru
        _
    $region40: #{attentive_stats_pool.1} parent=5 // pred_fallthru
      _
    %p1485 = scmp.le.s32.totalorder 2, %s11
    // Predicated region
    $region53: #{attentive_stats_pool.1} parent=5 // pred_check
      %p1486 = pneg %p1485
    $region54: #{attentive_stats_pool.1} parent=5 // pred_check_branch
      %1488 = sbr.rel (%p1486) target = $region56
    $region55: #{attentive_stats_pool.1} parent=5 // pred_region
      %s1489 = ssub.s32 %s11, 2
      // Predicated region
      $region57: #{attentive_stats_pool.1} parent=55 // pred_check
        %p1490 = pneg %p164
      $region58: #{attentive_stats_pool.1} parent=55 // pred_check_branch
        %1492 = sbr.rel (%p1490) target = $region60
      $region59: #{attentive_stats_pool.1} parent=55 // pred_region
        %p1493 = scmp.lt.s32.totalorder %s22, 1
        %s1494 = scalar_select %p1493, %s22, 1
        %s1495 = smul.addr %s1494, 2
        %s1496 = scalar_lea.vmem %s5, %s1495
      $region60: #{attentive_stats_pool.1} parent=55 // pred_fallthru
        _
    $region56: #{attentive_stats_pool.1} parent=5 // pred_fallthru
      _
  $region6: #{attentive_stats_pool.1} parent=0 // loop_footer
    %s15 = sadd.s32 1, %s11
  $region7: #{attentive_stats_pool.1} parent=0 // loop_footer_branch
    %10 = sbr.rel target = $region3
  $region8: #{attentive_stats_pool.1} parent=0 // loop_exit
    _

</llo_original>
